<compile_context>
chip_gen: v5e
topology: v5e:2x2
jax: 0.10.0
libtpu: 0.0.40
codegen_flags: <defaults>
</compile_context>

<pallas_src>
import functools

import jax
import jax.numpy as jnp
from jax.experimental import pallas as pl
from jax.experimental.pallas import tpu as pltpu

_VMEM_LIMIT_BYTES = 48 * 1024 * 1024  # > 32 MiB default scoped, < 64 MiB v7x physical.


def _round_up(x, m):
    return (x + m - 1) // m * m


def _pad_gate_axis(w, H, H_p, axis):
    """Pad a gate-concatenated [r|z|n] axis of width 3H to 3H_p, gate by gate, with zeros."""
    if H_p == H:
        return w
    r, z, n = jnp.split(w, 3, axis=axis)
    pad = [(0, 0)] * w.ndim
    pad[axis] = (0, H_p - H)
    return jnp.concatenate(
        [jnp.pad(r, pad), jnp.pad(z, pad), jnp.pad(n, pad)], axis=axis)


# ---------------------------------------------------------------------------
# Kernel 1: input projection for a large time block (parallel grid axis).
# ---------------------------------------------------------------------------
def _input_proj_kernel(x_ref, w_ref, b_ref, gx_ref):
    # x_ref: (TTm, B, D) f32,  w_ref: (D, 3H) bf16,  b_ref: (1, 3H) f32 (b_hh r/z folded in)
    # gx_ref: (TTm, B, 3H)
    TTm, Bb, D = x_ref.shape
    N = w_ref.shape[1]
    x2 = x_ref[...].reshape(TTm * Bb, D)          # merge leading dims -> one big MXU push
    y = jnp.dot(x2.astype(w_ref.dtype), w_ref[...],
                preferred_element_type=jnp.float32) + b_ref[...]
    gx_ref[...] = y.reshape(TTm, Bb, N).astype(gx_ref.dtype)


# ---------------------------------------------------------------------------
# Kernel 2: fused GRU recurrence + classifier head.
# ---------------------------------------------------------------------------
def _gru_fused_kernel(gx_ref, whh_ref, bhhn_ref, wfc_ref, bfc_ref, out_ref,
                      h_carry, h_blk):
    # gx_ref:  (TT, BB, 3H)  precomputed x@W_ih^T + folded bias for this (time, batch) block
    # whh_ref: (H, 3H) bf16, bhhn_ref: (1, H) f32  (n-gate hidden bias only)
    # wfc_ref: (H, C) bf16,  bfc_ref: (1, C) f32
    # out_ref: (TT, BB, C)   lane-dense logits (C padded to 128)
    # h_carry: (BB, H) f32   persists across the sequential t grid axis
    # h_blk:   (TT, BB, H) f32  hidden states of this block, fed to the fc matmul
    H = h_carry.shape[-1]
    TT = gx_ref.shape[0]

    # PyTorch default h0 = 0; re-init at the first time block of each batch block.
    @pl.when(pl.program_id(1) == 0)
    def _():
        h_carry[...] = jnp.zeros_like(h_carry)

    whh = whh_ref[...]          # hoisted: loaded once per grid step, not per timestep
    bhh_n = bhhn_ref[...]       # (1, H) f32

    def step(i, h_prev):
        gx = gx_ref[i].astype(jnp.float32)                       # (BB, 3H)
        gh = jnp.dot(h_prev.astype(whh.dtype), whh,
                     preferred_element_type=jnp.float32)         # (BB, 3H) f32
        # Gate order [r, z, n] (PyTorch layout). b_ih + b_hh_{r,z} already live in gx;
        # b_hh_n must stay inside the r*(...) term.
        r = jax.nn.sigmoid(gx[:, 0 * H:1 * H] + gh[:, 0 * H:1 * H])
        z = jax.nn.sigmoid(gx[:, 1 * H:2 * H] + gh[:, 1 * H:2 * H])
        n = jnp.tanh(gx[:, 2 * H:3 * H] + r * (gh[:, 2 * H:3 * H] + bhh_n))
        h_new = (1.0 - z) * n + z * h_prev
        h_blk[i] = h_new          # off the critical path (nothing reads it in the loop)
        return h_new              # carried in vregs, not through VMEM

    h_last = jax.lax.fori_loop(0, TT, step, h_carry[...], unroll=True)
    h_carry[...] = h_last         # single scratch write per time block

    # Classifier head for the whole time block: one MXU push riding in slack.
    h2 = h_blk[...].reshape(TT * gx_ref.shape[1], H)
    logits = jnp.dot(h2.astype(wfc_ref.dtype), wfc_ref[...],
                     preferred_element_type=jnp.float32) + bfc_ref[...]
    out_ref[...] = logits.reshape(out_ref.shape).astype(out_ref.dtype)


# ---------------------------------------------------------------------------
# Wrapper
# ---------------------------------------------------------------------------
@functools.partial(jax.jit,
                   static_argnames=("time_block", "batch_block", "mxu_dtype", "gx_dtype"))
def gru_classifier_forward(x, params, *, time_block=8, batch_block=None,
                           mxu_dtype=jnp.bfloat16, gx_dtype=jnp.float32):
    """x: (B, T, D) float32 -> (B, T, num_classes) float32.

    time_block:  recurrence time block (multiple of 8).
    batch_block: None -> one batch block (v5e/v6e); on v7x pass B_p//2 (multiple of 8).
    mxu_dtype:   dtype of matmul operands (bf16 recommended; f32 for bit-tight results).
    gx_dtype:    storage dtype of the gx_all intermediate (bf16 halves HBM traffic on v5e).
    """
    B, T, D = x.shape
    wih_t = params["weight_ih_t"]   # (D, 3H)
    whh_t = params["weight_hh_t"]   # (H, 3H)
    bih = params["bias_ih"]         # (1, 3H)
    bhh = params["bias_hh"]         # (1, 3H)
    wfc_t = params["fc_weight_t"]   # (H, C)
    bfc = params["fc_bias"]         # (1, C)
    H = whh_t.shape[0]
    C = wfc_t.shape[1]

    # Hardware-friendly padded sizes (sublane mult-of-8, lane mult-of-128).
    B_p = _round_up(B, 8)
    D_p = _round_up(D, 128)
    H_p = _round_up(H, 128)
    C_p = _round_up(C, 128)

    TT = time_block
    assert TT % 8 == 0
    # Decoupled (larger) time block for the input-projection matmul: aim for >= 512 rows,
    # but never exceed the padded sequence length.
    T_r = _round_up(T, TT)
    TT_mm = min(_round_up(max(TT, -(-512 // B_p)), TT), T_r)
    T_p = _round_up(T, TT_mm)       # divisible by both TT_mm and TT

    BB = B_p if batch_block is None else batch_block
    assert BB % 8 == 0 and B_p % BB == 0
    n_b_blocks = B_p // BB
    n_t_blocks = T_p // TT
    n_mm_blocks = T_p // TT_mm

    # --- parameter preparation -------------------------------------------------------
    # Fold b_hh_r / b_hh_z into the input-projection bias; keep b_hh_n separate (it must
    # stay inside the r*(...) term of the n gate).
    bih_fold = jnp.concatenate([bih[:, :2 * H] + bhh[:, :2 * H], bih[:, 2 * H:]], axis=1)
    bhh_n = bhh[:, 2 * H:3 * H]

    # Zero-pad. Padded hidden columns get zero weights & biases so they stay exactly 0
    # through the recurrence and never leak into real gates or logits.
    wih_p = _pad_gate_axis(jnp.pad(wih_t, ((0, D_p - D), (0, 0))),
                           H, H_p, axis=1).astype(mxu_dtype)
    whh_p = _pad_gate_axis(jnp.pad(whh_t, ((0, H_p - H), (0, 0))),
                           H, H_p, axis=1).astype(mxu_dtype)
    bih_p = _pad_gate_axis(bih_fold, H, H_p, axis=1)                       # f32
    bhhn_p = jnp.pad(bhh_n, ((0, 0), (0, H_p - H)))                        # f32 (1, H_p)
    wfc_p = jnp.pad(wfc_t, ((0, H_p - H), (0, C_p - C))).astype(mxu_dtype)
    bfc_p = jnp.pad(bfc, ((0, 0), (0, C_p - C)))                           # f32

    # Pad + go time-major once (fuses into the padding copy we need anyway).
    x_tm = jnp.transpose(
        jnp.pad(x, ((0, B_p - B), (0, T_p - T), (0, D_p - D))), (1, 0, 2))  # (T_p, B_p, D_p)

    gx_bytes = jnp.dtype(gx_dtype).itemsize
    w_bytes = jnp.dtype(mxu_dtype).itemsize

    # --- 1) Input projection for ALL timesteps (hoisted out of the recurrence). -------
    gx_all = pl.pallas_call(
        _input_proj_kernel,
        out_shape=jax.ShapeDtypeStruct((T_p, B_p, 3 * H_p), gx_dtype),
        grid=(n_mm_blocks,),
        in_specs=[
            pl.BlockSpec((TT_mm, B_p, D_p), lambda t: (t, 0, 0)),
            pl.BlockSpec((D_p, 3 * H_p), lambda t: (0, 0)),
            pl.BlockSpec((1, 3 * H_p), lambda t: (0, 0)),
        ],
        out_specs=pl.BlockSpec((TT_mm, B_p, 3 * H_p), lambda t: (t, 0, 0)),
        compiler_params=pltpu.CompilerParams(
            dimension_semantics=("parallel",),
            vmem_limit_bytes=_VMEM_LIMIT_BYTES),
        cost_estimate=pl.CostEstimate(
            flops=int(2 * T_p * B_p * D_p * 3 * H_p),
            transcendentals=0,
            bytes_accessed=int(T_p * B_p * D_p * 4
                               + D_p * 3 * H_p * w_bytes
                               + T_p * B_p * 3 * H_p * gx_bytes)),
    )(x_tm, wih_p, bih_p)

    # --- 2) Fused recurrence + classifier head (t innermost & sequential). ------------
    out_tm = pl.pallas_call(
        _gru_fused_kernel,
        out_shape=jax.ShapeDtypeStruct((T_p, B_p, C_p), jnp.float32),
        grid=(n_b_blocks, n_t_blocks),
        in_specs=[
            pl.BlockSpec((TT, BB, 3 * H_p), lambda b, t: (t, b, 0)),
            pl.BlockSpec((H_p, 3 * H_p), lambda b, t: (0, 0)),
            pl.BlockSpec((1, H_p), lambda b, t: (0, 0)),
            pl.BlockSpec((H_p, C_p), lambda b, t: (0, 0)),
            pl.BlockSpec((1, C_p), lambda b, t: (0, 0)),
        ],
        out_specs=pl.BlockSpec((TT, BB, C_p), lambda b, t: (t, b, 0)),
        scratch_shapes=[
            pltpu.VMEM((BB, H_p), jnp.float32),        # h carried across time blocks
            pltpu.VMEM((TT, BB, H_p), jnp.float32),    # block hidden states for fc matmul
        ],
        compiler_params=pltpu.CompilerParams(
            dimension_semantics=("parallel", "arbitrary"),
            vmem_limit_bytes=_VMEM_LIMIT_BYTES),
        cost_estimate=pl.CostEstimate(
            flops=int(2 * T_p * B_p * H_p * (3 * H_p + C_p)),
            transcendentals=int(3 * T_p * B_p * H_p),
            bytes_accessed=int(T_p * B_p * 3 * H_p * gx_bytes
                               + T_p * B_p * C_p * 4
                               + (H_p * 3 * H_p + H_p * C_p) * w_bytes)),
    )(gx_all, whh_p, bhhn_p, wfc_p, bfc_p)

    # Back to batch-major (batch_first=True) and strip padding (fuses into one copy).
    return jnp.transpose(out_tm, (1, 0, 2))[:B, :T, :C]


def init_params(key, input_dim, hidden_size, num_classes):
    ks = jax.random.split(key, 6)
    scale = 1.0 / jnp.sqrt(hidden_size)
    # PyTorch stores weight_ih (3H, D), weight_hh (3H, H); we pass transposed.
    w_ih = jax.random.uniform(ks[0], (3 * hidden_size, input_dim),
                              jnp.float32, -scale, scale)
    w_hh = jax.random.uniform(ks[1], (3 * hidden_size, hidden_size),
                              jnp.float32, -scale, scale)
    b_ih = jax.random.uniform(ks[2], (3 * hidden_size,), jnp.float32, -scale, scale)
    b_hh = jax.random.uniform(ks[3], (3 * hidden_size,), jnp.float32, -scale, scale)
    fc_scale = 1.0 / jnp.sqrt(hidden_size)
    w_fc = jax.random.uniform(ks[4], (num_classes, hidden_size),
                              jnp.float32, -fc_scale, fc_scale)
    b_fc = jax.random.uniform(ks[5], (num_classes,), jnp.float32, -fc_scale, fc_scale)
    return {
        "weight_ih_t": w_ih.T,
        "weight_hh_t": w_hh.T,
        "bias_ih": b_ih[None, :],
        "bias_hh": b_hh[None, :],
        "fc_weight_t": w_fc.T,
        "fc_bias": b_fc[None, :],
    }


def _reference_forward(x, params):
    """Pure-JAX f32 reference (lax.scan) mirroring torch.nn.GRU + nn.Linear semantics."""
    H = params["weight_hh_t"].shape[0]
    wih_t, whh_t = params["weight_ih_t"], params["weight_hh_t"]
    bih, bhh = params["bias_ih"][0], params["bias_hh"][0]
    wfc_t, bfc = params["fc_weight_t"], params["fc_bias"][0]

    def step(h, x_t):
        gx = x_t @ wih_t + bih
        gh = h @ whh_t + bhh
        r = jax.nn.sigmoid(gx[:, :H] + gh[:, :H])
        z = jax.nn.sigmoid(gx[:, H:2 * H] + gh[:, H:2 * H])
        n = jnp.tanh(gx[:, 2 * H:] + r * gh[:, 2 * H:])
        h_new = (1.0 - z) * n + z * h
        return h_new, h_new @ wfc_t + bfc

    B = x.shape[0]
    h0 = jnp.zeros((B, H), jnp.float32)
    _, out = jax.lax.scan(step, h0, jnp.transpose(x, (1, 0, 2)))
    return jnp.transpose(out, (1, 0, 2))


if __name__ == "__main__":
    B, T, D, H, C = 2, 8, 4, 32, 10
    key = jax.random.PRNGKey(0)
    k_x, k_p = jax.random.split(key)
    x = jax.random.normal(k_x, (B, T, D), jnp.float32)
    params = init_params(k_p, D, H, C)

    out = jax.block_until_ready(gru_classifier_forward(x, params))
    ref = jax.block_until_ready(_reference_forward(x, params))

    assert out.shape == (B, T, C)
    # bf16 MXU operands (f32 accumulation / gate math) -> relaxed tolerance vs f32 reference.
    assert jnp.allclose(out, ref, atol=2e-2, rtol=2e-2), \
        float(jnp.max(jnp.abs(out - ref)))

    print("KERNEL_OK")
</pallas_src>

<mosaic_0001>
module attributes {stable_mosaic.version = 11 : i64} {
  func.func @_input_proj_kernel(%arg0: i32, %arg1: memref<8x8x128xf32, #tpu.memory_space<vmem>>, %arg2: memref<128x384xbf16, #tpu.memory_space<vmem>>, %arg3: memref<1x384xf32, #tpu.memory_space<vmem>>, %arg4: memref<8x8x384xf32, #tpu.memory_space<vmem>>) attributes {dimension_semantics = [#tpu.dimension_semantics<parallel>], iteration_bounds = array<i64: 1>, scalar_prefetch = 0 : i64, scratch_operands = 0 : i64, tpu.core_type = #tpu.core_type<tc>, window_params = [{transform_indices = @transform_0, window_bounds = array<i64: 8, 8, 128>}, {pipeline_mode = #tpu.pipeline_mode<synchronous>, transform_indices = @transform_1, window_bounds = array<i64: 128, 384>}, {pipeline_mode = #tpu.pipeline_mode<synchronous>, transform_indices = @transform_2, window_bounds = array<i64: 1, 384>}, {transform_indices = @transform_3, window_bounds = array<i64: 8, 8, 384>}]} {
    %c0 = arith.constant 0 : index
    %c0_0 = arith.constant 0 : index
    %c0_1 = arith.constant 0 : index
    %0 = vector.load %arg1[%c0, %c0_0, %c0_1] : memref<8x8x128xf32, #tpu.memory_space<vmem>>, vector<8x8x128xf32>
    %1 = vector.shape_cast %0 : vector<8x8x128xf32> to vector<64x128xf32>
    %2 = arith.truncf %1 : vector<64x128xf32> to vector<64x128xbf16>
    %c0_2 = arith.constant 0 : index
    %c0_3 = arith.constant 0 : index
    %3 = vector.load %arg2[%c0_2, %c0_3] : memref<128x384xbf16, #tpu.memory_space<vmem>>, vector<128x384xbf16>
    %cst = arith.constant dense<0.000000e+00> : vector<64x384xf32>
    %4 = tpu.matmul %2, %3, %cst {dimension_numbers = #tpu.dot_dimension_numbers<[1], [0], [0], [1], [0, 0, 1, 1], [], []>} : vector<64x128xbf16>, vector<128x384xbf16>, vector<64x384xf32> -> vector<64x384xf32>
    %c0_4 = arith.constant 0 : index
    %c0_5 = arith.constant 0 : index
    %5 = vector.load %arg3[%c0_4, %c0_5] : memref<1x384xf32, #tpu.memory_space<vmem>>, vector<1x384xf32>
    %6 = vector.broadcast %5 : vector<1x384xf32> to vector<64x384xf32>
    %7 = arith.addf %4, %6 : vector<64x384xf32>
    %8 = vector.shape_cast %7 : vector<64x384xf32> to vector<8x8x384xf32>
    %c0_6 = arith.constant 0 : index
    %c0_7 = arith.constant 0 : index
    %c0_8 = arith.constant 0 : index
    %9 = vector.load %arg4[%c0_6, %c0_7, %c0_8] : memref<8x8x384xf32, #tpu.memory_space<vmem>>, vector<8x8x384xf32>
    tpu.vector_store %arg4[%c0_6, %c0_7, %c0_8], %8 {strides = array<i32>} : memref<8x8x384xf32, #tpu.memory_space<vmem>>, vector<8x8x384xf32>,
    return
  }
  func.func @transform_0(%arg0: i32) -> (i32, i32, i32) {
    %c0_i32 = arith.constant 0 : i32
    %c0_i32_0 = arith.constant 0 : i32
    %c0_i32_1 = arith.constant 0 : i32
    return %arg0, %c0_i32, %c0_i32_0 : i32, i32, i32
  }
  func.func @transform_1(%arg0: i32) -> (i32, i32) {
    %c0_i32 = arith.constant 0 : i32
    %c0_i32_0 = arith.constant 0 : i32
    %c0_i32_1 = arith.constant 0 : i32
    return %c0_i32, %c0_i32_0 : i32, i32
  }
  func.func @transform_2(%arg0: i32) -> (i32, i32) {
    %c0_i32 = arith.constant 0 : i32
    %c0_i32_0 = arith.constant 0 : i32
    %c0_i32_1 = arith.constant 0 : i32
    return %c0_i32, %c0_i32_0 : i32, i32
  }
  func.func @transform_3(%arg0: i32) -> (i32, i32, i32) {
    %c0_i32 = arith.constant 0 : i32
    %c0_i32_0 = arith.constant 0 : i32
    %c0_i32_1 = arith.constant 0 : i32
    return %arg0, %c0_i32, %c0_i32_0 : i32, i32, i32
  }
}

module attributes {stable_mosaic.version = 11 : i64} {
  func.func @_gru_fused_kernel(%arg0: i32, %arg1: i32, %arg2: memref<8x8x384xf32, #tpu.memory_space<vmem>>, %arg3: memref<128x384xbf16, #tpu.memory_space<vmem>>, %arg4: memref<1x128xf32, #tpu.memory_space<vmem>>, %arg5: memref<128x128xbf16, #tpu.memory_space<vmem>>, %arg6: memref<1x128xf32, #tpu.memory_space<vmem>>, %arg7: memref<8x8x128xf32, #tpu.memory_space<vmem>>, %arg8: memref<8x128xf32, #tpu.memory_space<vmem>>, %arg9: memref<8x8x128xf32, #tpu.memory_space<vmem>>) attributes {dimension_semantics = [#tpu.dimension_semantics<parallel>, #tpu.dimension_semantics<arbitrary>], iteration_bounds = array<i64: 1, 1>, scalar_prefetch = 0 : i64, scratch_operands = 2 : i64, tpu.core_type = #tpu.core_type<tc>, window_params = [{transform_indices = @transform_0, window_bounds = array<i64: 8, 8, 384>}, {pipeline_mode = #tpu.pipeline_mode<synchronous>, transform_indices = @transform_1, window_bounds = array<i64: 128, 384>}, {pipeline_mode = #tpu.pipeline_mode<synchronous>, transform_indices = @transform_2, window_bounds = array<i64: 1, 128>}, {pipeline_mode = #tpu.pipeline_mode<synchronous>, transform_indices = @transform_3, window_bounds = array<i64: 128, 128>}, {pipeline_mode = #tpu.pipeline_mode<synchronous>, transform_indices = @transform_4, window_bounds = array<i64: 1, 128>}, {transform_indices = @transform_5, window_bounds = array<i64: 8, 8, 128>}]} {
    %c0_i32 = arith.constant 0 : i32
    %0 = arith.cmpi eq, %arg1, %c0_i32 : i32
    %1 = arith.extui %0 : i1 to i32
    %c0_i32_0 = arith.constant 0 : i32
    %2 = arith.cmpi ne, %1, %c0_i32_0 : i32
    scf.if %2 {
      %cst_83 = arith.constant 0.000000e+00 : f32
      %313 = vector.broadcast %cst_83 : f32 to vector<8x128xf32>
      %c0_84 = arith.constant 0 : index
      %c0_85 = arith.constant 0 : index
      %314 = vector.load %arg8[%c0_84, %c0_85] : memref<8x128xf32, #tpu.memory_space<vmem>>, vector<8x128xf32>
      tpu.vector_store %arg8[%c0_84, %c0_85], %313 {strides = array<i32>} : memref<8x128xf32, #tpu.memory_space<vmem>>, vector<8x128xf32>,
    } else {
    }
    %c0 = arith.constant 0 : index
    %c0_1 = arith.constant 0 : index
    %3 = vector.load %arg3[%c0, %c0_1] : memref<128x384xbf16, #tpu.memory_space<vmem>>, vector<128x384xbf16>
    %c0_2 = arith.constant 0 : index
    %c0_3 = arith.constant 0 : index
    %4 = vector.load %arg4[%c0_2, %c0_3] : memref<1x128xf32, #tpu.memory_space<vmem>>, vector<1x128xf32>
    %c0_4 = arith.constant 0 : index
    %c0_5 = arith.constant 0 : index
    %5 = vector.load %arg8[%c0_4, %c0_5] : memref<8x128xf32, #tpu.memory_space<vmem>>, vector<8x128xf32>
    %c0_i32_6 = arith.constant 0 : i32
    %6 = arith.index_cast %c0_i32_6 : i32 to index
    %c0_7 = arith.constant 0 : index
    %c0_8 = arith.constant 0 : index
    %7 = vector.load %arg2[%6, %c0_7, %c0_8] : memref<8x8x384xf32, #tpu.memory_space<vmem>>, vector<1x8x384xf32>
    %8 = vector.shape_cast %7 : vector<1x8x384xf32> to vector<8x384xf32>
    %9 = arith.truncf %5 : vector<8x128xf32> to vector<8x128xbf16>
    %cst = arith.constant dense<0.000000e+00> : vector<8x384xf32>
    %10 = tpu.matmul %9, %3, %cst {dimension_numbers = #tpu.dot_dimension_numbers<[1], [0], [0], [1], [0, 0, 1, 1], [], []>} : vector<8x128xbf16>, vector<128x384xbf16>, vector<8x384xf32> -> vector<8x384xf32>
    %11 = vector.extract_strided_slice %8 {offsets = [0, 0], sizes = [8, 128], strides = [1, 1]} : vector<8x384xf32> to vector<8x128xf32>
    %12 = vector.extract_strided_slice %10 {offsets = [0, 0], sizes = [8, 128], strides = [1, 1]} : vector<8x384xf32> to vector<8x128xf32>
    %13 = arith.addf %11, %12 : vector<8x128xf32>
    %14 = arith.negf %13 : vector<8x128xf32>
    %15 = math.exp %14 : vector<8x128xf32>
    %cst_9 = arith.constant 1.000000e+00 : f32
    %16 = vector.broadcast %cst_9 : f32 to vector<8x128xf32>
    %17 = arith.addf %16, %15 : vector<8x128xf32>
    %18 = arith.divf %16, %17 : vector<8x128xf32>
    %19 = vector.extract_strided_slice %8 {offsets = [0, 128], sizes = [8, 128], strides = [1, 1]} : vector<8x384xf32> to vector<8x128xf32>
    %20 = vector.extract_strided_slice %10 {offsets = [0, 128], sizes = [8, 128], strides = [1, 1]} : vector<8x384xf32> to vector<8x128xf32>
    %21 = arith.addf %19, %20 : vector<8x128xf32>
    %22 = arith.negf %21 : vector<8x128xf32>
    %23 = math.exp %22 : vector<8x128xf32>
    %cst_10 = arith.constant 1.000000e+00 : f32
    %24 = vector.broadcast %cst_10 : f32 to vector<8x128xf32>
    %25 = arith.addf %24, %23 : vector<8x128xf32>
    %26 = arith.divf %24, %25 : vector<8x128xf32>
    %27 = vector.extract_strided_slice %8 {offsets = [0, 256], sizes = [8, 128], strides = [1, 1]} : vector<8x384xf32> to vector<8x128xf32>
    %28 = vector.extract_strided_slice %10 {offsets = [0, 256], sizes = [8, 128], strides = [1, 1]} : vector<8x384xf32> to vector<8x128xf32>
    %29 = vector.broadcast %4 : vector<1x128xf32> to vector<8x128xf32>
    %30 = arith.addf %28, %29 : vector<8x128xf32>
    %31 = arith.mulf %18, %30 : vector<8x128xf32>
    %32 = arith.addf %27, %31 : vector<8x128xf32>
    %33 = math.tanh %32 : vector<8x128xf32>
    %cst_11 = arith.constant 1.000000e+00 : f32
    %34 = vector.broadcast %cst_11 : f32 to vector<8x128xf32>
    %35 = arith.subf %34, %26 : vector<8x128xf32>
    %36 = arith.mulf %35, %33 : vector<8x128xf32>
    %37 = arith.mulf %26, %5 : vector<8x128xf32>
    %38 = arith.addf %36, %37 : vector<8x128xf32>
    %39 = arith.index_cast %c0_i32_6 : i32 to index
    %c0_12 = arith.constant 0 : index
    %c0_13 = arith.constant 0 : index
    %40 = vector.load %arg9[%39, %c0_12, %c0_13] : memref<8x8x128xf32, #tpu.memory_space<vmem>>, vector<1x8x128xf32>
    %41 = vector.shape_cast %40 : vector<1x8x128xf32> to vector<8x128xf32>
    %42 = vector.shape_cast %38 : vector<8x128xf32> to vector<1x8x128xf32>
    tpu.vector_store %arg9[%39, %c0_12, %c0_13], %42 {strides = array<i32>} : memref<8x8x128xf32, #tpu.memory_space<vmem>>, vector<1x8x128xf32>,
    %c1_i32 = arith.constant 1 : i32
    %43 = arith.index_cast %c1_i32 : i32 to index
    %c0_14 = arith.constant 0 : index
    %c0_15 = arith.constant 0 : index
    %44 = vector.load %arg2[%43, %c0_14, %c0_15] : memref<8x8x384xf32, #tpu.memory_space<vmem>>, vector<1x8x384xf32>
    %45 = vector.shape_cast %44 : vector<1x8x384xf32> to vector<8x384xf32>
    %46 = arith.truncf %38 : vector<8x128xf32> to vector<8x128xbf16>
    %cst_16 = arith.constant dense<0.000000e+00> : vector<8x384xf32>
    %47 = tpu.matmul %46, %3, %cst_16 {dimension_numbers = #tpu.dot_dimension_numbers<[1], [0], [0], [1], [0, 0, 1, 1], [], []>} : vector<8x128xbf16>, vector<128x384xbf16>, vector<8x384xf32> -> vector<8x384xf32>
    %48 = vector.extract_strided_slice %45 {offsets = [0, 0], sizes = [8, 128], strides = [1, 1]} : vector<8x384xf32> to vector<8x128xf32>
    %49 = vector.extract_strided_slice %47 {offsets = [0, 0], sizes = [8, 128], strides = [1, 1]} : vector<8x384xf32> to vector<8x128xf32>
    %50 = arith.addf %48, %49 : vector<8x128xf32>
    %51 = arith.negf %50 : vector<8x128xf32>
    %52 = math.exp %51 : vector<8x128xf32>
    %cst_17 = arith.constant 1.000000e+00 : f32
    %53 = vector.broadcast %cst_17 : f32 to vector<8x128xf32>
    %54 = arith.addf %53, %52 : vector<8x128xf32>
    %55 = arith.divf %53, %54 : vector<8x128xf32>
    %56 = vector.extract_strided_slice %45 {offsets = [0, 128], sizes = [8, 128], strides = [1, 1]} : vector<8x384xf32> to vector<8x128xf32>
    %57 = vector.extract_strided_slice %47 {offsets = [0, 128], sizes = [8, 128], strides = [1, 1]} : vector<8x384xf32> to vector<8x128xf32>
    %58 = arith.addf %56, %57 : vector<8x128xf32>
    %59 = arith.negf %58 : vector<8x128xf32>
    %60 = math.exp %59 : vector<8x128xf32>
    %cst_18 = arith.constant 1.000000e+00 : f32
    %61 = vector.broadcast %cst_18 : f32 to vector<8x128xf32>
    %62 = arith.addf %61, %60 : vector<8x128xf32>
    %63 = arith.divf %61, %62 : vector<8x128xf32>
    %64 = vector.extract_strided_slice %45 {offsets = [0, 256], sizes = [8, 128], strides = [1, 1]} : vector<8x384xf32> to vector<8x128xf32>
    %65 = vector.extract_strided_slice %47 {offsets = [0, 256], sizes = [8, 128], strides = [1, 1]} : vector<8x384xf32> to vector<8x128xf32>
    %66 = vector.broadcast %4 : vector<1x128xf32> to vector<8x128xf32>
    %67 = arith.addf %65, %66 : vector<8x128xf32>
    %68 = arith.mulf %55, %67 : vector<8x128xf32>
    %69 = arith.addf %64, %68 : vector<8x128xf32>
    %70 = math.tanh %69 : vector<8x128xf32>
    %cst_19 = arith.constant 1.000000e+00 : f32
    %71 = vector.broadcast %cst_19 : f32 to vector<8x128xf32>
    %72 = arith.subf %71, %63 : vector<8x128xf32>
    %73 = arith.mulf %72, %70 : vector<8x128xf32>
    %74 = arith.mulf %63, %38 : vector<8x128xf32>
    %75 = arith.addf %73, %74 : vector<8x128xf32>
    %76 = arith.index_cast %c1_i32 : i32 to index
    %c0_20 = arith.constant 0 : index
    %c0_21 = arith.constant 0 : index
    %77 = vector.load %arg9[%76, %c0_20, %c0_21] : memref<8x8x128xf32, #tpu.memory_space<vmem>>, vector<1x8x128xf32>
    %78 = vector.shape_cast %77 : vector<1x8x128xf32> to vector<8x128xf32>
    %79 = vector.shape_cast %75 : vector<8x128xf32> to vector<1x8x128xf32>
    tpu.vector_store %arg9[%76, %c0_20, %c0_21], %79 {strides = array<i32>} : memref<8x8x128xf32, #tpu.memory_space<vmem>>, vector<1x8x128xf32>,
    %c2_i32 = arith.constant 2 : i32
    %80 = arith.index_cast %c2_i32 : i32 to index
    %c0_22 = arith.constant 0 : index
    %c0_23 = arith.constant 0 : index
    %81 = vector.load %arg2[%80, %c0_22, %c0_23] : memref<8x8x384xf32, #tpu.memory_space<vmem>>, vector<1x8x384xf32>
    %82 = vector.shape_cast %81 : vector<1x8x384xf32> to vector<8x384xf32>
    %83 = arith.truncf %75 : vector<8x128xf32> to vector<8x128xbf16>
    %cst_24 = arith.constant dense<0.000000e+00> : vector<8x384xf32>
    %84 = tpu.matmul %83, %3, %cst_24 {dimension_numbers = #tpu.dot_dimension_numbers<[1], [0], [0], [1], [0, 0, 1, 1], [], []>} : vector<8x128xbf16>, vector<128x384xbf16>, vector<8x384xf32> -> vector<8x384xf32>
    %85 = vector.extract_strided_slice %82 {offsets = [0, 0], sizes = [8, 128], strides = [1, 1]} : vector<8x384xf32> to vector<8x128xf32>
    %86 = vector.extract_strided_slice %84 {offsets = [0, 0], sizes = [8, 128], strides = [1, 1]} : vector<8x384xf32> to vector<8x128xf32>
    %87 = arith.addf %85, %86 : vector<8x128xf32>
    %88 = arith.negf %87 : vector<8x128xf32>
    %89 = math.exp %88 : vector<8x128xf32>
    %cst_25 = arith.constant 1.000000e+00 : f32
    %90 = vector.broadcast %cst_25 : f32 to vector<8x128xf32>
    %91 = arith.addf %90, %89 : vector<8x128xf32>
    %92 = arith.divf %90, %91 : vector<8x128xf32>
    %93 = vector.extract_strided_slice %82 {offsets = [0, 128], sizes = [8, 128], strides = [1, 1]} : vector<8x384xf32> to vector<8x128xf32>
    %94 = vector.extract_strided_slice %84 {offsets = [0, 128], sizes = [8, 128], strides = [1, 1]} : vector<8x384xf32> to vector<8x128xf32>
    %95 = arith.addf %93, %94 : vector<8x128xf32>
    %96 = arith.negf %95 : vector<8x128xf32>
    %97 = math.exp %96 : vector<8x128xf32>
    %cst_26 = arith.constant 1.000000e+00 : f32
    %98 = vector.broadcast %cst_26 : f32 to vector<8x128xf32>
    %99 = arith.addf %98, %97 : vector<8x128xf32>
    %100 = arith.divf %98, %99 : vector<8x128xf32>
    %101 = vector.extract_strided_slice %82 {offsets = [0, 256], sizes = [8, 128], strides = [1, 1]} : vector<8x384xf32> to vector<8x128xf32>
    %102 = vector.extract_strided_slice %84 {offsets = [0, 256], sizes = [8, 128], strides = [1, 1]} : vector<8x384xf32> to vector<8x128xf32>
    %103 = vector.broadcast %4 : vector<1x128xf32> to vector<8x128xf32>
    %104 = arith.addf %102, %103 : vector<8x128xf32>
    %105 = arith.mulf %92, %104 : vector<8x128xf32>
    %106 = arith.addf %101, %105 : vector<8x128xf32>
    %107 = math.tanh %106 : vector<8x128xf32>
    %cst_27 = arith.constant 1.000000e+00 : f32
    %108 = vector.broadcast %cst_27 : f32 to vector<8x128xf32>
    %109 = arith.subf %108, %100 : vector<8x128xf32>
    %110 = arith.mulf %109, %107 : vector<8x128xf32>
    %111 = arith.mulf %100, %75 : vector<8x128xf32>
    %112 = arith.addf %110, %111 : vector<8x128xf32>
    %113 = arith.index_cast %c2_i32 : i32 to index
    %c0_28 = arith.constant 0 : index
    %c0_29 = arith.constant 0 : index
    %114 = vector.load %arg9[%113, %c0_28, %c0_29] : memref<8x8x128xf32, #tpu.memory_space<vmem>>, vector<1x8x128xf32>
    %115 = vector.shape_cast %114 : vector<1x8x128xf32> to vector<8x128xf32>
    %116 = vector.shape_cast %112 : vector<8x128xf32> to vector<1x8x128xf32>
    tpu.vector_store %arg9[%113, %c0_28, %c0_29], %116 {strides = array<i32>} : memref<8x8x128xf32, #tpu.memory_space<vmem>>, vector<1x8x128xf32>,
    %c3_i32 = arith.constant 3 : i32
    %117 = arith.index_cast %c3_i32 : i32 to index
    %c0_30 = arith.constant 0 : index
    %c0_31 = arith.constant 0 : index
    %118 = vector.load %arg2[%117, %c0_30, %c0_31] : memref<8x8x384xf32, #tpu.memory_space<vmem>>, vector<1x8x384xf32>
    %119 = vector.shape_cast %118 : vector<1x8x384xf32> to vector<8x384xf32>
    %120 = arith.truncf %112 : vector<8x128xf32> to vector<8x128xbf16>
    %cst_32 = arith.constant dense<0.000000e+00> : vector<8x384xf32>
    %121 = tpu.matmul %120, %3, %cst_32 {dimension_numbers = #tpu.dot_dimension_numbers<[1], [0], [0], [1], [0, 0, 1, 1], [], []>} : vector<8x128xbf16>, vector<128x384xbf16>, vector<8x384xf32> -> vector<8x384xf32>
    %122 = vector.extract_strided_slice %119 {offsets = [0, 0], sizes = [8, 128], strides = [1, 1]} : vector<8x384xf32> to vector<8x128xf32>
    %123 = vector.extract_strided_slice %121 {offsets = [0, 0], sizes = [8, 128], strides = [1, 1]} : vector<8x384xf32> to vector<8x128xf32>
    %124 = arith.addf %122, %123 : vector<8x128xf32>
    %125 = arith.negf %124 : vector<8x128xf32>
    %126 = math.exp %125 : vector<8x128xf32>
    %cst_33 = arith.constant 1.000000e+00 : f32
    %127 = vector.broadcast %cst_33 : f32 to vector<8x128xf32>
    %128 = arith.addf %127, %126 : vector<8x128xf32>
    %129 = arith.divf %127, %128 : vector<8x128xf32>
    %130 = vector.extract_strided_slice %119 {offsets = [0, 128], sizes = [8, 128], strides = [1, 1]} : vector<8x384xf32> to vector<8x128xf32>
    %131 = vector.extract_strided_slice %121 {offsets = [0, 128], sizes = [8, 128], strides = [1, 1]} : vector<8x384xf32> to vector<8x128xf32>
    %132 = arith.addf %130, %131 : vector<8x128xf32>
    %133 = arith.negf %132 : vector<8x128xf32>
    %134 = math.exp %133 : vector<8x128xf32>
    %cst_34 = arith.constant 1.000000e+00 : f32
    %135 = vector.broadcast %cst_34 : f32 to vector<8x128xf32>
    %136 = arith.addf %135, %134 : vector<8x128xf32>
    %137 = arith.divf %135, %136 : vector<8x128xf32>
    %138 = vector.extract_strided_slice %119 {offsets = [0, 256], sizes = [8, 128], strides = [1, 1]} : vector<8x384xf32> to vector<8x128xf32>
    %139 = vector.extract_strided_slice %121 {offsets = [0, 256], sizes = [8, 128], strides = [1, 1]} : vector<8x384xf32> to vector<8x128xf32>
    %140 = vector.broadcast %4 : vector<1x128xf32> to vector<8x128xf32>
    %141 = arith.addf %139, %140 : vector<8x128xf32>
    %142 = arith.mulf %129, %141 : vector<8x128xf32>
    %143 = arith.addf %138, %142 : vector<8x128xf32>
    %144 = math.tanh %143 : vector<8x128xf32>
    %cst_35 = arith.constant 1.000000e+00 : f32
    %145 = vector.broadcast %cst_35 : f32 to vector<8x128xf32>
    %146 = arith.subf %145, %137 : vector<8x128xf32>
    %147 = arith.mulf %146, %144 : vector<8x128xf32>
    %148 = arith.mulf %137, %112 : vector<8x128xf32>
    %149 = arith.addf %147, %148 : vector<8x128xf32>
    %150 = arith.index_cast %c3_i32 : i32 to index
    %c0_36 = arith.constant 0 : index
    %c0_37 = arith.constant 0 : index
    %151 = vector.load %arg9[%150, %c0_36, %c0_37] : memref<8x8x128xf32, #tpu.memory_space<vmem>>, vector<1x8x128xf32>
    %152 = vector.shape_cast %151 : vector<1x8x128xf32> to vector<8x128xf32>
    %153 = vector.shape_cast %149 : vector<8x128xf32> to vector<1x8x128xf32>
    tpu.vector_store %arg9[%150, %c0_36, %c0_37], %153 {strides = array<i32>} : memref<8x8x128xf32, #tpu.memory_space<vmem>>, vector<1x8x128xf32>,
    %c4_i32 = arith.constant 4 : i32
    %154 = arith.index_cast %c4_i32 : i32 to index
    %c0_38 = arith.constant 0 : index
    %c0_39 = arith.constant 0 : index
    %155 = vector.load %arg2[%154, %c0_38, %c0_39] : memref<8x8x384xf32, #tpu.memory_space<vmem>>, vector<1x8x384xf32>
    %156 = vector.shape_cast %155 : vector<1x8x384xf32> to vector<8x384xf32>
    %157 = arith.truncf %149 : vector<8x128xf32> to vector<8x128xbf16>
    %cst_40 = arith.constant dense<0.000000e+00> : vector<8x384xf32>
    %158 = tpu.matmul %157, %3, %cst_40 {dimension_numbers = #tpu.dot_dimension_numbers<[1], [0], [0], [1], [0, 0, 1, 1], [], []>} : vector<8x128xbf16>, vector<128x384xbf16>, vector<8x384xf32> -> vector<8x384xf32>
    %159 = vector.extract_strided_slice %156 {offsets = [0, 0], sizes = [8, 128], strides = [1, 1]} : vector<8x384xf32> to vector<8x128xf32>
    %160 = vector.extract_strided_slice %158 {offsets = [0, 0], sizes = [8, 128], strides = [1, 1]} : vector<8x384xf32> to vector<8x128xf32>
    %161 = arith.addf %159, %160 : vector<8x128xf32>
    %162 = arith.negf %161 : vector<8x128xf32>
    %163 = math.exp %162 : vector<8x128xf32>
    %cst_41 = arith.constant 1.000000e+00 : f32
    %164 = vector.broadcast %cst_41 : f32 to vector<8x128xf32>
    %165 = arith.addf %164, %163 : vector<8x128xf32>
    %166 = arith.divf %164, %165 : vector<8x128xf32>
    %167 = vector.extract_strided_slice %156 {offsets = [0, 128], sizes = [8, 128], strides = [1, 1]} : vector<8x384xf32> to vector<8x128xf32>
    %168 = vector.extract_strided_slice %158 {offsets = [0, 128], sizes = [8, 128], strides = [1, 1]} : vector<8x384xf32> to vector<8x128xf32>
    %169 = arith.addf %167, %168 : vector<8x128xf32>
    %170 = arith.negf %169 : vector<8x128xf32>
    %171 = math.exp %170 : vector<8x128xf32>
    %cst_42 = arith.constant 1.000000e+00 : f32
    %172 = vector.broadcast %cst_42 : f32 to vector<8x128xf32>
    %173 = arith.addf %172, %171 : vector<8x128xf32>
    %174 = arith.divf %172, %173 : vector<8x128xf32>
    %175 = vector.extract_strided_slice %156 {offsets = [0, 256], sizes = [8, 128], strides = [1, 1]} : vector<8x384xf32> to vector<8x128xf32>
    %176 = vector.extract_strided_slice %158 {offsets = [0, 256], sizes = [8, 128], strides = [1, 1]} : vector<8x384xf32> to vector<8x128xf32>
    %177 = vector.broadcast %4 : vector<1x128xf32> to vector<8x128xf32>
    %178 = arith.addf %176, %177 : vector<8x128xf32>
    %179 = arith.mulf %166, %178 : vector<8x128xf32>
    %180 = arith.addf %175, %179 : vector<8x128xf32>
    %181 = math.tanh %180 : vector<8x128xf32>
    %cst_43 = arith.constant 1.000000e+00 : f32
    %182 = vector.broadcast %cst_43 : f32 to vector<8x128xf32>
    %183 = arith.subf %182, %174 : vector<8x128xf32>
    %184 = arith.mulf %183, %181 : vector<8x128xf32>
    %185 = arith.mulf %174, %149 : vector<8x128xf32>
    %186 = arith.addf %184, %185 : vector<8x128xf32>
    %187 = arith.index_cast %c4_i32 : i32 to index
    %c0_44 = arith.constant 0 : index
    %c0_45 = arith.constant 0 : index
    %188 = vector.load %arg9[%187, %c0_44, %c0_45] : memref<8x8x128xf32, #tpu.memory_space<vmem>>, vector<1x8x128xf32>
    %189 = vector.shape_cast %188 : vector<1x8x128xf32> to vector<8x128xf32>
    %190 = vector.shape_cast %186 : vector<8x128xf32> to vector<1x8x128xf32>
    tpu.vector_store %arg9[%187, %c0_44, %c0_45], %190 {strides = array<i32>} : memref<8x8x128xf32, #tpu.memory_space<vmem>>, vector<1x8x128xf32>,
    %c5_i32 = arith.constant 5 : i32
    %191 = arith.index_cast %c5_i32 : i32 to index
    %c0_46 = arith.constant 0 : index
    %c0_47 = arith.constant 0 : index
    %192 = vector.load %arg2[%191, %c0_46, %c0_47] : memref<8x8x384xf32, #tpu.memory_space<vmem>>, vector<1x8x384xf32>
    %193 = vector.shape_cast %192 : vector<1x8x384xf32> to vector<8x384xf32>
    %194 = arith.truncf %186 : vector<8x128xf32> to vector<8x128xbf16>
    %cst_48 = arith.constant dense<0.000000e+00> : vector<8x384xf32>
    %195 = tpu.matmul %194, %3, %cst_48 {dimension_numbers = #tpu.dot_dimension_numbers<[1], [0], [0], [1], [0, 0, 1, 1], [], []>} : vector<8x128xbf16>, vector<128x384xbf16>, vector<8x384xf32> -> vector<8x384xf32>
    %196 = vector.extract_strided_slice %193 {offsets = [0, 0], sizes = [8, 128], strides = [1, 1]} : vector<8x384xf32> to vector<8x128xf32>
    %197 = vector.extract_strided_slice %195 {offsets = [0, 0], sizes = [8, 128], strides = [1, 1]} : vector<8x384xf32> to vector<8x128xf32>
    %198 = arith.addf %196, %197 : vector<8x128xf32>
    %199 = arith.negf %198 : vector<8x128xf32>
    %200 = math.exp %199 : vector<8x128xf32>
    %cst_49 = arith.constant 1.000000e+00 : f32
    %201 = vector.broadcast %cst_49 : f32 to vector<8x128xf32>
    %202 = arith.addf %201, %200 : vector<8x128xf32>
    %203 = arith.divf %201, %202 : vector<8x128xf32>
    %204 = vector.extract_strided_slice %193 {offsets = [0, 128], sizes = [8, 128], strides = [1, 1]} : vector<8x384xf32> to vector<8x128xf32>
    %205 = vector.extract_strided_slice %195 {offsets = [0, 128], sizes = [8, 128], strides = [1, 1]} : vector<8x384xf32> to vector<8x128xf32>
    %206 = arith.addf %204, %205 : vector<8x128xf32>
    %207 = arith.negf %206 : vector<8x128xf32>
    %208 = math.exp %207 : vector<8x128xf32>
    %cst_50 = arith.constant 1.000000e+00 : f32
    %209 = vector.broadcast %cst_50 : f32 to vector<8x128xf32>
    %210 = arith.addf %209, %208 : vector<8x128xf32>
    %211 = arith.divf %209, %210 : vector<8x128xf32>
    %212 = vector.extract_strided_slice %193 {offsets = [0, 256], sizes = [8, 128], strides = [1, 1]} : vector<8x384xf32> to vector<8x128xf32>
    %213 = vector.extract_strided_slice %195 {offsets = [0, 256], sizes = [8, 128], strides = [1, 1]} : vector<8x384xf32> to vector<8x128xf32>
    %214 = vector.broadcast %4 : vector<1x128xf32> to vector<8x128xf32>
    %215 = arith.addf %213, %214 : vector<8x128xf32>
    %216 = arith.mulf %203, %215 : vector<8x128xf32>
    %217 = arith.addf %212, %216 : vector<8x128xf32>
    %218 = math.tanh %217 : vector<8x128xf32>
    %cst_51 = arith.constant 1.000000e+00 : f32
    %219 = vector.broadcast %cst_51 : f32 to vector<8x128xf32>
    %220 = arith.subf %219, %211 : vector<8x128xf32>
    %221 = arith.mulf %220, %218 : vector<8x128xf32>
    %222 = arith.mulf %211, %186 : vector<8x128xf32>
    %223 = arith.addf %221, %222 : vector<8x128xf32>
    %224 = arith.index_cast %c5_i32 : i32 to index
    %c0_52 = arith.constant 0 : index
    %c0_53 = arith.constant 0 : index
    %225 = vector.load %arg9[%224, %c0_52, %c0_53] : memref<8x8x128xf32, #tpu.memory_space<vmem>>, vector<1x8x128xf32>
    %226 = vector.shape_cast %225 : vector<1x8x128xf32> to vector<8x128xf32>
    %227 = vector.shape_cast %223 : vector<8x128xf32> to vector<1x8x128xf32>
    tpu.vector_store %arg9[%224, %c0_52, %c0_53], %227 {strides = array<i32>} : memref<8x8x128xf32, #tpu.memory_space<vmem>>, vector<1x8x128xf32>,
    %c6_i32 = arith.constant 6 : i32
    %228 = arith.index_cast %c6_i32 : i32 to index
    %c0_54 = arith.constant 0 : index
    %c0_55 = arith.constant 0 : index
    %229 = vector.load %arg2[%228, %c0_54, %c0_55] : memref<8x8x384xf32, #tpu.memory_space<vmem>>, vector<1x8x384xf32>
    %230 = vector.shape_cast %229 : vector<1x8x384xf32> to vector<8x384xf32>
    %231 = arith.truncf %223 : vector<8x128xf32> to vector<8x128xbf16>
    %cst_56 = arith.constant dense<0.000000e+00> : vector<8x384xf32>
    %232 = tpu.matmul %231, %3, %cst_56 {dimension_numbers = #tpu.dot_dimension_numbers<[1], [0], [0], [1], [0, 0, 1, 1], [], []>} : vector<8x128xbf16>, vector<128x384xbf16>, vector<8x384xf32> -> vector<8x384xf32>
    %233 = vector.extract_strided_slice %230 {offsets = [0, 0], sizes = [8, 128], strides = [1, 1]} : vector<8x384xf32> to vector<8x128xf32>
    %234 = vector.extract_strided_slice %232 {offsets = [0, 0], sizes = [8, 128], strides = [1, 1]} : vector<8x384xf32> to vector<8x128xf32>
    %235 = arith.addf %233, %234 : vector<8x128xf32>
    %236 = arith.negf %235 : vector<8x128xf32>
    %237 = math.exp %236 : vector<8x128xf32>
    %cst_57 = arith.constant 1.000000e+00 : f32
    %238 = vector.broadcast %cst_57 : f32 to vector<8x128xf32>
    %239 = arith.addf %238, %237 : vector<8x128xf32>
    %240 = arith.divf %238, %239 : vector<8x128xf32>
    %241 = vector.extract_strided_slice %230 {offsets = [0, 128], sizes = [8, 128], strides = [1, 1]} : vector<8x384xf32> to vector<8x128xf32>
    %242 = vector.extract_strided_slice %232 {offsets = [0, 128], sizes = [8, 128], strides = [1, 1]} : vector<8x384xf32> to vector<8x128xf32>
    %243 = arith.addf %241, %242 : vector<8x128xf32>
    %244 = arith.negf %243 : vector<8x128xf32>
    %245 = math.exp %244 : vector<8x128xf32>
    %cst_58 = arith.constant 1.000000e+00 : f32
    %246 = vector.broadcast %cst_58 : f32 to vector<8x128xf32>
    %247 = arith.addf %246, %245 : vector<8x128xf32>
    %248 = arith.divf %246, %247 : vector<8x128xf32>
    %249 = vector.extract_strided_slice %230 {offsets = [0, 256], sizes = [8, 128], strides = [1, 1]} : vector<8x384xf32> to vector<8x128xf32>
    %250 = vector.extract_strided_slice %232 {offsets = [0, 256], sizes = [8, 128], strides = [1, 1]} : vector<8x384xf32> to vector<8x128xf32>
    %251 = vector.broadcast %4 : vector<1x128xf32> to vector<8x128xf32>
    %252 = arith.addf %250, %251 : vector<8x128xf32>
    %253 = arith.mulf %240, %252 : vector<8x128xf32>
    %254 = arith.addf %249, %253 : vector<8x128xf32>
    %255 = math.tanh %254 : vector<8x128xf32>
    %cst_59 = arith.constant 1.000000e+00 : f32
    %256 = vector.broadcast %cst_59 : f32 to vector<8x128xf32>
    %257 = arith.subf %256, %248 : vector<8x128xf32>
    %258 = arith.mulf %257, %255 : vector<8x128xf32>
    %259 = arith.mulf %248, %223 : vector<8x128xf32>
    %260 = arith.addf %258, %259 : vector<8x128xf32>
    %261 = arith.index_cast %c6_i32 : i32 to index
    %c0_60 = arith.constant 0 : index
    %c0_61 = arith.constant 0 : index
    %262 = vector.load %arg9[%261, %c0_60, %c0_61] : memref<8x8x128xf32, #tpu.memory_space<vmem>>, vector<1x8x128xf32>
    %263 = vector.shape_cast %262 : vector<1x8x128xf32> to vector<8x128xf32>
    %264 = vector.shape_cast %260 : vector<8x128xf32> to vector<1x8x128xf32>
    tpu.vector_store %arg9[%261, %c0_60, %c0_61], %264 {strides = array<i32>} : memref<8x8x128xf32, #tpu.memory_space<vmem>>, vector<1x8x128xf32>,
    %c7_i32 = arith.constant 7 : i32
    %265 = arith.index_cast %c7_i32 : i32 to index
    %c0_62 = arith.constant 0 : index
    %c0_63 = arith.constant 0 : index
    %266 = vector.load %arg2[%265, %c0_62, %c0_63] : memref<8x8x384xf32, #tpu.memory_space<vmem>>, vector<1x8x384xf32>
    %267 = vector.shape_cast %266 : vector<1x8x384xf32> to vector<8x384xf32>
    %268 = arith.truncf %260 : vector<8x128xf32> to vector<8x128xbf16>
    %cst_64 = arith.constant dense<0.000000e+00> : vector<8x384xf32>
    %269 = tpu.matmul %268, %3, %cst_64 {dimension_numbers = #tpu.dot_dimension_numbers<[1], [0], [0], [1], [0, 0, 1, 1], [], []>} : vector<8x128xbf16>, vector<128x384xbf16>, vector<8x384xf32> -> vector<8x384xf32>
    %270 = vector.extract_strided_slice %267 {offsets = [0, 0], sizes = [8, 128], strides = [1, 1]} : vector<8x384xf32> to vector<8x128xf32>
    %271 = vector.extract_strided_slice %269 {offsets = [0, 0], sizes = [8, 128], strides = [1, 1]} : vector<8x384xf32> to vector<8x128xf32>
    %272 = arith.addf %270, %271 : vector<8x128xf32>
    %273 = arith.negf %272 : vector<8x128xf32>
    %274 = math.exp %273 : vector<8x128xf32>
    %cst_65 = arith.constant 1.000000e+00 : f32
    %275 = vector.broadcast %cst_65 : f32 to vector<8x128xf32>
    %276 = arith.addf %275, %274 : vector<8x128xf32>
    %277 = arith.divf %275, %276 : vector<8x128xf32>
    %278 = vector.extract_strided_slice %267 {offsets = [0, 128], sizes = [8, 128], strides = [1, 1]} : vector<8x384xf32> to vector<8x128xf32>
    %279 = vector.extract_strided_slice %269 {offsets = [0, 128], sizes = [8, 128], strides = [1, 1]} : vector<8x384xf32> to vector<8x128xf32>
    %280 = arith.addf %278, %279 : vector<8x128xf32>
    %281 = arith.negf %280 : vector<8x128xf32>
    %282 = math.exp %281 : vector<8x128xf32>
    %cst_66 = arith.constant 1.000000e+00 : f32
    %283 = vector.broadcast %cst_66 : f32 to vector<8x128xf32>
    %284 = arith.addf %283, %282 : vector<8x128xf32>
    %285 = arith.divf %283, %284 : vector<8x128xf32>
    %286 = vector.extract_strided_slice %267 {offsets = [0, 256], sizes = [8, 128], strides = [1, 1]} : vector<8x384xf32> to vector<8x128xf32>
    %287 = vector.extract_strided_slice %269 {offsets = [0, 256], sizes = [8, 128], strides = [1, 1]} : vector<8x384xf32> to vector<8x128xf32>
    %288 = vector.broadcast %4 : vector<1x128xf32> to vector<8x128xf32>
    %289 = arith.addf %287, %288 : vector<8x128xf32>
    %290 = arith.mulf %277, %289 : vector<8x128xf32>
    %291 = arith.addf %286, %290 : vector<8x128xf32>
    %292 = math.tanh %291 : vector<8x128xf32>
    %cst_67 = arith.constant 1.000000e+00 : f32
    %293 = vector.broadcast %cst_67 : f32 to vector<8x128xf32>
    %294 = arith.subf %293, %285 : vector<8x128xf32>
    %295 = arith.mulf %294, %292 : vector<8x128xf32>
    %296 = arith.mulf %285, %260 : vector<8x128xf32>
    %297 = arith.addf %295, %296 : vector<8x128xf32>
    %298 = arith.index_cast %c7_i32 : i32 to index
    %c0_68 = arith.constant 0 : index
    %c0_69 = arith.constant 0 : index
    %299 = vector.load %arg9[%298, %c0_68, %c0_69] : memref<8x8x128xf32, #tpu.memory_space<vmem>>, vector<1x8x128xf32>
    %300 = vector.shape_cast %299 : vector<1x8x128xf32> to vector<8x128xf32>
    %301 = vector.shape_cast %297 : vector<8x128xf32> to vector<1x8x128xf32>
    tpu.vector_store %arg9[%298, %c0_68, %c0_69], %301 {strides = array<i32>} : memref<8x8x128xf32, #tpu.memory_space<vmem>>, vector<1x8x128xf32>,
    %c8_i32 = arith.constant 8 : i32
    %c0_70 = arith.constant 0 : index
    %c0_71 = arith.constant 0 : index
    %302 = vector.load %arg8[%c0_70, %c0_71] : memref<8x128xf32, #tpu.memory_space<vmem>>, vector<8x128xf32>
    tpu.vector_store %arg8[%c0_70, %c0_71], %297 {strides = array<i32>} : memref<8x128xf32, #tpu.memory_space<vmem>>, vector<8x128xf32>,
    %c0_72 = arith.constant 0 : index
    %c0_73 = arith.constant 0 : index
    %c0_74 = arith.constant 0 : index
    %303 = vector.load %arg9[%c0_72, %c0_73, %c0_74] : memref<8x8x128xf32, #tpu.memory_space<vmem>>, vector<8x8x128xf32>
    %304 = vector.shape_cast %303 : vector<8x8x128xf32> to vector<64x128xf32>
    %305 = arith.truncf %304 : vector<64x128xf32> to vector<64x128xbf16>
    %c0_75 = arith.constant 0 : index
    %c0_76 = arith.constant 0 : index
    %306 = vector.load %arg5[%c0_75, %c0_76] : memref<128x128xbf16, #tpu.memory_space<vmem>>, vector<128x128xbf16>
    %cst_77 = arith.constant dense<0.000000e+00> : vector<64x128xf32>
    %307 = tpu.matmul %305, %306, %cst_77 {dimension_numbers = #tpu.dot_dimension_numbers<[1], [0], [0], [1], [0, 0, 1, 1], [], []>} : vector<64x128xbf16>, vector<128x128xbf16>, vector<64x128xf32> -> vector<64x128xf32>
    %c0_78 = arith.constant 0 : index
    %c0_79 = arith.constant 0 : index
    %308 = vector.load %arg6[%c0_78, %c0_79] : memref<1x128xf32, #tpu.memory_space<vmem>>, vector<1x128xf32>
    %309 = vector.broadcast %308 : vector<1x128xf32> to vector<64x128xf32>
    %310 = arith.addf %307, %309 : vector<64x128xf32>
    %311 = vector.shape_cast %310 : vector<64x128xf32> to vector<8x8x128xf32>
    %c0_80 = arith.constant 0 : index
    %c0_81 = arith.constant 0 : index
    %c0_82 = arith.constant 0 : index
    %312 = vector.load %arg7[%c0_80, %c0_81, %c0_82] : memref<8x8x128xf32, #tpu.memory_space<vmem>>, vector<8x8x128xf32>
    tpu.vector_store %arg7[%c0_80, %c0_81, %c0_82], %311 {strides = array<i32>} : memref<8x8x128xf32, #tpu.memory_space<vmem>>, vector<8x8x128xf32>,
    return
  }
  func.func @transform_0(%arg0: i32, %arg1: i32) -> (i32, i32, i32) {
    %c0_i32 = arith.constant 0 : i32
    %c0_i32_0 = arith.constant 0 : i32
    return %arg1, %arg0, %c0_i32 : i32, i32, i32
  }
  func.func @transform_1(%arg0: i32, %arg1: i32) -> (i32, i32) {
    %c0_i32 = arith.constant 0 : i32
    %c0_i32_0 = arith.constant 0 : i32
    %c0_i32_1 = arith.constant 0 : i32
    return %c0_i32, %c0_i32_0 : i32, i32
  }
  func.func @transform_2(%arg0: i32, %arg1: i32) -> (i32, i32) {
    %c0_i32 = arith.constant 0 : i32
    %c0_i32_0 = arith.constant 0 : i32
    %c0_i32_1 = arith.constant 0 : i32
    return %c0_i32, %c0_i32_0 : i32, i32
  }
  func.func @transform_3(%arg0: i32, %arg1: i32) -> (i32, i32) {
    %c0_i32 = arith.constant 0 : i32
    %c0_i32_0 = arith.constant 0 : i32
    %c0_i32_1 = arith.constant 0 : i32
    return %c0_i32, %c0_i32_0 : i32, i32
  }
  func.func @transform_4(%arg0: i32, %arg1: i32) -> (i32, i32) {
    %c0_i32 = arith.constant 0 : i32
    %c0_i32_0 = arith.constant 0 : i32
    %c0_i32_1 = arith.constant 0 : i32
    return %c0_i32, %c0_i32_0 : i32, i32
  }
  func.func @transform_5(%arg0: i32, %arg1: i32) -> (i32, i32, i32) {
    %c0_i32 = arith.constant 0 : i32
    %c0_i32_0 = arith.constant 0 : i32
    return %arg1, %arg0, %c0_i32 : i32, i32, i32
  }
}

</mosaic_0001>

<llo_original>
// kernel: gru_classifier_forward.2
$region0: #{gru_classifier_forward.2}
  #allocation0 [shape = 'u32[]', space=smem, size = 0x4, offset = 0x4, fixed_abs, tag = 'smem constant byte address 0x4 - core index']
  #allocation1 [shape = 'u32[72,128]{1,0:T(1,128)}', space=vmem, size = 0x9000, scoped, tag = 'internal scratch']
  %s0 = inlined_call_operand.vmem [shape: f32[8,8,128], index: 0, kind: input, shape index: {}]
  %s1 = inlined_call_operand.vmem [shape: bf16[128,384], index: 1, kind: input, shape index: {}]
  %s2 = inlined_call_operand.vmem [shape: f32[1,384], index: 2, kind: input, shape index: {}]
  %s3 = inlined_call_operand.vmem [shape: f32[8,8,384], index: 3, kind: output, shape index: {}]
  %s4 = sld [smem:[#allocation0]]
  $region22: #{gru_classifier_forward.2} parent=0
    _
  %s6 = ssub.s32 1, %s4
  %s7 = scalar_select 0, %s6, %s4
  // Predicated region
  $region2: #{gru_classifier_forward.2} parent=0 // pred_check
    _
  $region3: #{gru_classifier_forward.2} parent=0 // pred_check_branch
    %9 = sbr.rel (0) target = $region5
  $region4: #{gru_classifier_forward.2} parent=0 // pred_region
    _
  $region5: #{gru_classifier_forward.2} parent=0 // pred_fallthru
    _
  // Predicated region
  $region6: #{gru_classifier_forward.2} parent=0 // pred_check
    _
  $region7: #{gru_classifier_forward.2} parent=0 // pred_check_branch
    %11 = sbr.rel (0) target = $region9
  $region8: #{gru_classifier_forward.2} parent=0 // pred_region
    _
  $region9: #{gru_classifier_forward.2} parent=0 // pred_fallthru
    _
  // Predicated region
  $region10: #{gru_classifier_forward.2} parent=0 // pred_check
    _
  $region11: #{gru_classifier_forward.2} parent=0 // pred_check_branch
    %13 = sbr.rel (0) target = $region13
  $region12: #{gru_classifier_forward.2} parent=0 // pred_region
    _
  $region13: #{gru_classifier_forward.2} parent=0 // pred_fallthru
    _
  %v14 = vld [vmem:[%s0] sm:$0xff]
  %v15 = vld [vmem:[%s0 + $0x8] sm:$0xff]
  %v16 = vld [vmem:[%s0 + $0x10] sm:$0xff]
  %v17 = vld [vmem:[%s0 + $0x18] sm:$0xff]
  %v18 = vld [vmem:[%s0 + $0x20] sm:$0xff]
  %v19 = vld [vmem:[%s0 + $0x28] sm:$0xff]
  %v20 = vld [vmem:[%s0 + $0x30] sm:$0xff]
  %v21 = vld [vmem:[%s0 + $0x38] sm:$0xff]
  %v22 = vpack.c.bf16 %v15, %v14
  %v23 = vpack.c.bf16 %v17, %v16
  %v24 = vpack.c.bf16 %v19, %v18
  %v25 = vpack.c.bf16 %v21, %v20
  %v26 = vld [vmem:[%s1] sm:$0xff]
  %v27 = vld [vmem:[%s1 + $0x8] sm:$0xf]
  %v28 = vld [vmem:[%s1 + $0xc] sm:$0xff]
  %v29 = vld [vmem:[%s1 + $0x14] sm:$0xf]
  %v30 = vld [vmem:[%s1 + $0x18] sm:$0xff]
  %v31 = vld [vmem:[%s1 + $0x20] sm:$0xf]
  %v32 = vld [vmem:[%s1 + $0x24] sm:$0xff]
  %v33 = vld [vmem:[%s1 + $0x2c] sm:$0xf]
  %v34 = vld [vmem:[%s1 + $0x30] sm:$0xff]
  %v35 = vld [vmem:[%s1 + $0x38] sm:$0xf]
  %v36 = vld [vmem:[%s1 + $0x3c] sm:$0xff]
  %v37 = vld [vmem:[%s1 + $0x44] sm:$0xf]
  %v38 = vld [vmem:[%s1 + $0x48] sm:$0xff]
  %v39 = vld [vmem:[%s1 + $0x50] sm:$0xf]
  %v40 = vld [vmem:[%s1 + $0x54] sm:$0xff]
  %v41 = vld [vmem:[%s1 + $0x5c] sm:$0xf]
  %v42 = vld [vmem:[%s1 + $0x60] sm:$0xff]
  %v43 = vld [vmem:[%s1 + $0x68] sm:$0xf]
  %v44 = vld [vmem:[%s1 + $0x6c] sm:$0xff]
  %v45 = vld [vmem:[%s1 + $0x74] sm:$0xf]
  %v46 = vld [vmem:[%s1 + $0x78] sm:$0xff]
  %v47 = vld [vmem:[%s1 + $0x80] sm:$0xf]
  %v48 = vld [vmem:[%s1 + $0x84] sm:$0xff]
  %v49 = vld [vmem:[%s1 + $0x8c] sm:$0xf]
  %v50 = vld [vmem:[%s1 + $0x90] sm:$0xff]
  %v51 = vld [vmem:[%s1 + $0x98] sm:$0xf]
  %v52 = vld [vmem:[%s1 + $0x9c] sm:$0xff]
  %v53 = vld [vmem:[%s1 + $0xa4] sm:$0xf]
  %v54 = vld [vmem:[%s1 + $0xa8] sm:$0xff]
  %v55 = vld [vmem:[%s1 + $0xb0] sm:$0xf]
  %v56 = vld [vmem:[%s1 + $0xb4] sm:$0xff]
  %v57 = vld [vmem:[%s1 + $0xbc] sm:$0xf]
  %v58 = vld [vmem:[%s2] sm:$0x7]
  %v60 = vperm.slane %v58, 0
  %v61 = vperm.slane %v58, 1
  %v62 = vperm.slane %v58, 2
  %v98 = vunpack.c.l.b16 %v26
  %v99 = vunpack.c.h.b16 %v26
  %v100 = vunpack.c.l.b16 %v27
  %v101 = vunpack.c.l.b16 %v28
  %v102 = vunpack.c.h.b16 %v28
  %v103 = vunpack.c.l.b16 %v29
  %v104 = vunpack.c.l.b16 %v30
  %v105 = vunpack.c.h.b16 %v30
  %v106 = vunpack.c.l.b16 %v31
  %v107 = vunpack.c.l.b16 %v32
  %v108 = vunpack.c.h.b16 %v32
  %v109 = vunpack.c.l.b16 %v33
  %v110 = vunpack.c.l.b16 %v34
  %v111 = vunpack.c.h.b16 %v34
  %v112 = vunpack.c.l.b16 %v35
  %v113 = vunpack.c.l.b16 %v36
  %v114 = vunpack.c.h.b16 %v36
  %v115 = vunpack.c.l.b16 %v37
  %v116 = vunpack.c.l.b16 %v38
  %v117 = vunpack.c.h.b16 %v38
  %v118 = vunpack.c.l.b16 %v39
  %v119 = vunpack.c.l.b16 %v40
  %v120 = vunpack.c.h.b16 %v40
  %v121 = vunpack.c.l.b16 %v41
  %v122 = vunpack.c.l.b16 %v42
  %v123 = vunpack.c.h.b16 %v42
  %v124 = vunpack.c.l.b16 %v43
  %v125 = vunpack.c.l.b16 %v44
  %v126 = vunpack.c.h.b16 %v44
  %v127 = vunpack.c.l.b16 %v45
  %v128 = vunpack.c.l.b16 %v46
  %v129 = vunpack.c.h.b16 %v46
  %v130 = vunpack.c.l.b16 %v47
  %v131 = vunpack.c.l.b16 %v48
  %v132 = vunpack.c.h.b16 %v48
  %v133 = vunpack.c.l.b16 %v49
  %v134 = vunpack.c.l.b16 %v50
  %v135 = vunpack.c.h.b16 %v50
  %v136 = vunpack.c.l.b16 %v51
  %v137 = vunpack.c.l.b16 %v52
  %v138 = vunpack.c.h.b16 %v52
  %v139 = vunpack.c.l.b16 %v53
  %v140 = vunpack.c.l.b16 %v54
  %v141 = vunpack.c.h.b16 %v54
  %v142 = vunpack.c.l.b16 %v55
  %v143 = vunpack.c.l.b16 %v56
  %v144 = vunpack.c.h.b16 %v56
  %v145 = vunpack.c.l.b16 %v57
  %v146 = vpack.c.b16 %v101, %v98
  %v147 = vpack.c.b16 %v102, %v99
  %v148 = vpack.c.b16 %v103, %v100
  %v149 = vpack.c.b16 %v107, %v104
  %v150 = vpack.c.b16 %v108, %v105
  %v151 = vpack.c.b16 %v109, %v106
  %v152 = vpack.c.b16 %v113, %v110
  %v153 = vpack.c.b16 %v114, %v111
  %v154 = vpack.c.b16 %v115, %v112
  %v155 = vpack.c.b16 %v119, %v116
  %v156 = vpack.c.b16 %v120, %v117
  %v157 = vpack.c.b16 %v121, %v118
  %v158 = vpack.c.b16 %v125, %v122
  %v159 = vpack.c.b16 %v126, %v123
  %v160 = vpack.c.b16 %v127, %v124
  %v161 = vpack.c.b16 %v131, %v128
  %v162 = vpack.c.b16 %v132, %v129
  %v163 = vpack.c.b16 %v133, %v130
  %v164 = vpack.c.b16 %v137, %v134
  %v165 = vpack.c.b16 %v138, %v135
  %v166 = vpack.c.b16 %v139, %v136
  %v167 = vpack.c.b16 %v143, %v140
  %v168 = vpack.c.b16 %v144, %v141
  %v169 = vpack.c.b16 %v145, %v142
  %194 = vmatpush.bf16.msra.mxu0 %v167
  %195 = vmatpush.bf16.msra.mxu0 %v164
  %196 = vmatpush.bf16.msra.mxu0 %v161
  %197 = vmatpush.bf16.msra.mxu0 %v158
  %198 = vmatpush.bf16.msra.mxu0 %v155
  %199 = vmatpush.bf16.msra.mxu0 %v152
  %200 = vmatpush.bf16.msra.mxu0 %v149
  %201 = vmatpush.bf16.msra.mxu0 %v146
  %202 = vmatmul.bf16.gmra.mxu0 %v22
  %v203 = vpop.f32.mrf.mxu0
  %v204 = vadd.f32 %v60, %v203
  %v205 = vpop.f32.mrf.mxu0
  %v206 = vadd.f32 %v60, %v205
  %207 = vmatmul.bf16.gmra.mxu0 %v23
  %v208 = vpop.f32.mrf.mxu0
  %v209 = vadd.f32 %v60, %v208
  %v210 = vpop.f32.mrf.mxu0
  %v211 = vadd.f32 %v60, %v210
  %212 = vmatmul.bf16.gmra.mxu0 %v24
  %v213 = vpop.f32.mrf.mxu0
  %v214 = vadd.f32 %v60, %v213
  %v215 = vpop.f32.mrf.mxu0
  %v216 = vadd.f32 %v60, %v215
  %217 = vmatmul.bf16.gmra.mxu0 %v25
  %v218 = vpop.f32.mrf.mxu0
  %v219 = vadd.f32 %v60, %v218
  %v220 = vpop.f32.mrf.mxu0
  %v221 = vadd.f32 %v60, %v220
  %222 = vdwg.mxu0
  %223 = vmatpush.bf16.msra.mxu0 %v168
  %224 = vmatpush.bf16.msra.mxu0 %v165
  %225 = vmatpush.bf16.msra.mxu0 %v162
  %226 = vmatpush.bf16.msra.mxu0 %v159
  %227 = vmatpush.bf16.msra.mxu0 %v156
  %228 = vmatpush.bf16.msra.mxu0 %v153
  %229 = vmatpush.bf16.msra.mxu0 %v150
  %230 = vmatpush.bf16.msra.mxu0 %v147
  %231 = vmatmul.bf16.gmra.mxu0 %v22
  %v232 = vpop.f32.mrf.mxu0
  %v233 = vadd.f32 %v61, %v232
  %v234 = vpop.f32.mrf.mxu0
  %v235 = vadd.f32 %v61, %v234
  %236 = vmatmul.bf16.gmra.mxu0 %v23
  %v237 = vpop.f32.mrf.mxu0
  %v238 = vadd.f32 %v61, %v237
  %v239 = vpop.f32.mrf.mxu0
  %v240 = vadd.f32 %v61, %v239
  %241 = vmatmul.bf16.gmra.mxu0 %v24
  %v242 = vpop.f32.mrf.mxu0
  %v243 = vadd.f32 %v61, %v242
  %v244 = vpop.f32.mrf.mxu0
  %v245 = vadd.f32 %v61, %v244
  %246 = vmatmul.bf16.gmra.mxu0 %v25
  %v247 = vpop.f32.mrf.mxu0
  %v248 = vadd.f32 %v61, %v247
  %v249 = vpop.f32.mrf.mxu0
  %v250 = vadd.f32 %v61, %v249
  %251 = vdwg.mxu0
  %252 = vmatpush.bf16.msra.mxu0 %v169
  %253 = vmatpush.bf16.msra.mxu0 %v166
  %254 = vmatpush.bf16.msra.mxu0 %v163
  %255 = vmatpush.bf16.msra.mxu0 %v160
  %256 = vmatpush.bf16.msra.mxu0 %v157
  %257 = vmatpush.bf16.msra.mxu0 %v154
  %258 = vmatpush.bf16.msra.mxu0 %v151
  %259 = vmatpush.bf16.msra.mxu0 %v148
  %260 = vmatmul.bf16.gmra.mxu0 %v22
  %v261 = vpop.f32.mrf.mxu0
  %v262 = vadd.f32 %v62, %v261
  %v263 = vpop.f32.mrf.mxu0
  %v264 = vadd.f32 %v62, %v263
  %265 = vmatmul.bf16.gmra.mxu0 %v23
  %v266 = vpop.f32.mrf.mxu0
  %v267 = vadd.f32 %v62, %v266
  %v268 = vpop.f32.mrf.mxu0
  %v269 = vadd.f32 %v62, %v268
  %270 = vmatmul.bf16.gmra.mxu0 %v24
  %v271 = vpop.f32.mrf.mxu0
  %v272 = vadd.f32 %v62, %v271
  %v273 = vpop.f32.mrf.mxu0
  %v274 = vadd.f32 %v62, %v273
  %275 = vmatmul.bf16.gmra.mxu0 %v25
  %v276 = vpop.f32.mrf.mxu0
  %v277 = vadd.f32 %v62, %v276
  %v278 = vpop.f32.mrf.mxu0
  %v279 = vadd.f32 %v62, %v278
  %280 = vdwg.mxu0
  %281 = vst [vmem:[%s3] sm:$0xff] %v204
  %282 = vst [vmem:[%s3 + $0x8] sm:$0xff] %v233
  %283 = vst [vmem:[%s3 + $0x10] sm:$0xff] %v262
  %284 = vst [vmem:[%s3 + $0x18] sm:$0xff] %v206
  %285 = vst [vmem:[%s3 + $0x20] sm:$0xff] %v235
  %286 = vst [vmem:[%s3 + $0x28] sm:$0xff] %v264
  %287 = vst [vmem:[%s3 + $0x30] sm:$0xff] %v209
  %288 = vst [vmem:[%s3 + $0x38] sm:$0xff] %v238
  %289 = vst [vmem:[%s3 + $0x40] sm:$0xff] %v267
  %290 = vst [vmem:[%s3 + $0x48] sm:$0xff] %v211
  %291 = vst [vmem:[%s3 + $0x50] sm:$0xff] %v240
  %292 = vst [vmem:[%s3 + $0x58] sm:$0xff] %v269
  %293 = vst [vmem:[%s3 + $0x60] sm:$0xff] %v214
  %294 = vst [vmem:[%s3 + $0x68] sm:$0xff] %v243
  %295 = vst [vmem:[%s3 + $0x70] sm:$0xff] %v272
  %296 = vst [vmem:[%s3 + $0x78] sm:$0xff] %v216
  %297 = vst [vmem:[%s3 + $0x80] sm:$0xff] %v245
  %298 = vst [vmem:[%s3 + $0x88] sm:$0xff] %v274
  %299 = vst [vmem:[%s3 + $0x90] sm:$0xff] %v219
  %300 = vst [vmem:[%s3 + $0x98] sm:$0xff] %v248
  %301 = vst [vmem:[%s3 + $0xa0] sm:$0xff] %v277
  %302 = vst [vmem:[%s3 + $0xa8] sm:$0xff] %v221
  %303 = vst [vmem:[%s3 + $0xb0] sm:$0xff] %v250
  %304 = vst [vmem:[%s3 + $0xb8] sm:$0xff] %v279
  // Predicated region
  $region14: #{gru_classifier_forward.2} parent=0 // pred_check
    _
  $region15: #{gru_classifier_forward.2} parent=0 // pred_check_branch
    %306 = sbr.rel (0) target = $region17
  $region16: #{gru_classifier_forward.2} parent=0 // pred_region
    _
  $region17: #{gru_classifier_forward.2} parent=0 // pred_fallthru
    _
  // Predicated region
  $region18: #{gru_classifier_forward.2} parent=0 // pred_check
    _
  $region19: #{gru_classifier_forward.2} parent=0 // pred_check_branch
    %308 = sbr.rel (0) target = $region21
  $region20: #{gru_classifier_forward.2} parent=0 // pred_region
    _
  $region21: #{gru_classifier_forward.2} parent=0 // pred_fallthru
    _

// kernel: gru_classifier_forward.3
$region0: #{gru_classifier_forward.3}
  #allocation0 [shape = 'u32[]', space=smem, size = 0x4, offset = 0x4, fixed_abs, tag = 'smem constant byte address 0x4 - core index']
  #allocation1 [shape = 'u32[72,128]{1,0:T(1,128)}', space=vmem, size = 0x9000, scoped, tag = 'internal scratch']
  #allocation2 [shape = 'f32[8,128]{1,0:T(8,128)}', space=vmem, size = 0x1000, scoped, tag = 'scratch operand']
  #allocation3 [shape = 'f32[8,8,128]{2,1,0:T(8,128)}', space=vmem, size = 0x8000, scoped, tag = 'scratch operand']
  %s0 = inlined_call_operand.vmem [shape: f32[8,8,384], index: 0, kind: input, shape index: {}]
  %s1 = inlined_call_operand.vmem [shape: bf16[128,384], index: 1, kind: input, shape index: {}]
  %s2 = inlined_call_operand.vmem [shape: f32[1,128], index: 2, kind: input, shape index: {}]
  %s3 = inlined_call_operand.vmem [shape: bf16[128,128], index: 3, kind: input, shape index: {}]
  %s4 = inlined_call_operand.vmem [shape: f32[1,128], index: 4, kind: input, shape index: {}]
  %s5 = inlined_call_operand.vmem [shape: f32[8,8,128], index: 5, kind: output, shape index: {}]
  %s6 = sld [smem:[#allocation0]]
  $region34: #{gru_classifier_forward.3} parent=0
    _
  %s8 = ssub.s32 1, %s6
  %s9 = scalar_select 0, %s8, %s6
  // Predicated region
  $region2: #{gru_classifier_forward.3} parent=0 // pred_check
    _
  $region3: #{gru_classifier_forward.3} parent=0 // pred_check_branch
    %11 = sbr.rel (0) target = $region5
  $region4: #{gru_classifier_forward.3} parent=0 // pred_region
    _
  $region5: #{gru_classifier_forward.3} parent=0 // pred_fallthru
    _
  // Predicated region
  $region6: #{gru_classifier_forward.3} parent=0 // pred_check
    _
  $region7: #{gru_classifier_forward.3} parent=0 // pred_check_branch
    %13 = sbr.rel (0) target = $region9
  $region8: #{gru_classifier_forward.3} parent=0 // pred_region
    _
  $region9: #{gru_classifier_forward.3} parent=0 // pred_fallthru
    _
  // Predicated region
  $region10: #{gru_classifier_forward.3} parent=0 // pred_check
    _
  $region11: #{gru_classifier_forward.3} parent=0 // pred_check_branch
    %15 = sbr.rel (0) target = $region13
  $region12: #{gru_classifier_forward.3} parent=0 // pred_region
    _
  $region13: #{gru_classifier_forward.3} parent=0 // pred_fallthru
    _
  // Predicated region
  $region14: #{gru_classifier_forward.3} parent=0 // pred_check
    _
  $region15: #{gru_classifier_forward.3} parent=0 // pred_check_branch
    %17 = sbr.rel (0) target = $region17
  $region16: #{gru_classifier_forward.3} parent=0 // pred_region
    _
  $region17: #{gru_classifier_forward.3} parent=0 // pred_fallthru
    _
  // Predicated region
  $region18: #{gru_classifier_forward.3} parent=0 // pred_check
    _
  $region19: #{gru_classifier_forward.3} parent=0 // pred_check_branch
    %19 = sbr.rel (0) target = $region21
  $region20: #{gru_classifier_forward.3} parent=0 // pred_region
    _
  $region21: #{gru_classifier_forward.3} parent=0 // pred_fallthru
    _
  %p20 = scmp.eq.s32.totalorder 0, 0
  // Predicated region
  $region22: #{gru_classifier_forward.3} parent=0 // pred_check
    %p21 = pneg %p20
  $region23: #{gru_classifier_forward.3} parent=0 // pred_check_branch
    %23 = sbr.rel (%p21) target = $region25
  $region24: #{gru_classifier_forward.3} parent=0 // pred_region
    %24 = vst [vmem:[#allocation2] sm:$0xff] 0.0
  $region25: #{gru_classifier_forward.3} parent=0 // pred_fallthru
    _
  %v25 = vld [vmem:[%s1] sm:$0xff]
  %v26 = vld [vmem:[%s1 + $0x8] sm:$0xf]
  %v27 = vld [vmem:[%s1 + $0xc] sm:$0xff]
  %v28 = vld [vmem:[%s1 + $0x14] sm:$0xf]
  %v29 = vld [vmem:[%s1 + $0x18] sm:$0xff]
  %v30 = vld [vmem:[%s1 + $0x20] sm:$0xf]
  %v31 = vld [vmem:[%s1 + $0x24] sm:$0xff]
  %v32 = vld [vmem:[%s1 + $0x2c] sm:$0xf]
  %v33 = vld [vmem:[%s1 + $0x30] sm:$0xff]
  %v34 = vld [vmem:[%s1 + $0x38] sm:$0xf]
  %v35 = vld [vmem:[%s1 + $0x3c] sm:$0xff]
  %v36 = vld [vmem:[%s1 + $0x44] sm:$0xf]
  %v37 = vld [vmem:[%s1 + $0x48] sm:$0xff]
  %v38 = vld [vmem:[%s1 + $0x50] sm:$0xf]
  %v39 = vld [vmem:[%s1 + $0x54] sm:$0xff]
  %v40 = vld [vmem:[%s1 + $0x5c] sm:$0xf]
  %v41 = vld [vmem:[%s1 + $0x60] sm:$0xff]
  %v42 = vld [vmem:[%s1 + $0x68] sm:$0xf]
  %v43 = vld [vmem:[%s1 + $0x6c] sm:$0xff]
  %v44 = vld [vmem:[%s1 + $0x74] sm:$0xf]
  %v45 = vld [vmem:[%s1 + $0x78] sm:$0xff]
  %v46 = vld [vmem:[%s1 + $0x80] sm:$0xf]
  %v47 = vld [vmem:[%s1 + $0x84] sm:$0xff]
  %v48 = vld [vmem:[%s1 + $0x8c] sm:$0xf]
  %v49 = vld [vmem:[%s1 + $0x90] sm:$0xff]
  %v50 = vld [vmem:[%s1 + $0x98] sm:$0xf]
  %v51 = vld [vmem:[%s1 + $0x9c] sm:$0xff]
  %v52 = vld [vmem:[%s1 + $0xa4] sm:$0xf]
  %v53 = vld [vmem:[%s1 + $0xa8] sm:$0xff]
  %v54 = vld [vmem:[%s1 + $0xb0] sm:$0xf]
  %v55 = vld [vmem:[%s1 + $0xb4] sm:$0xff]
  %v56 = vld [vmem:[%s1 + $0xbc] sm:$0xf]
  %v57 = vld [vmem:[%s2] sm:$0x1]
  %v58 = vld [vmem:[#allocation2] sm:$0xff]
  %v59 = vld [vmem:[%s0] sm:$0xff]
  %v60 = vld [vmem:[%s0 + $0x8] sm:$0xff]
  %v61 = vld [vmem:[%s0 + $0x10] sm:$0xff]
  %v62 = vpack.c.bf16 %v58, %v58
  %v95 = vunpack.c.l.b16 %v25
  %v96 = vunpack.c.h.b16 %v25
  %v97 = vunpack.c.l.b16 %v26
  %v98 = vunpack.c.l.b16 %v27
  %v99 = vunpack.c.h.b16 %v27
  %v100 = vunpack.c.l.b16 %v28
  %v101 = vunpack.c.l.b16 %v29
  %v102 = vunpack.c.h.b16 %v29
  %v103 = vunpack.c.l.b16 %v30
  %v104 = vunpack.c.l.b16 %v31
  %v105 = vunpack.c.h.b16 %v31
  %v106 = vunpack.c.l.b16 %v32
  %v107 = vunpack.c.l.b16 %v33
  %v108 = vunpack.c.h.b16 %v33
  %v109 = vunpack.c.l.b16 %v34
  %v110 = vunpack.c.l.b16 %v35
  %v111 = vunpack.c.h.b16 %v35
  %v112 = vunpack.c.l.b16 %v36
  %v113 = vunpack.c.l.b16 %v37
  %v114 = vunpack.c.h.b16 %v37
  %v115 = vunpack.c.l.b16 %v38
  %v116 = vunpack.c.l.b16 %v39
  %v117 = vunpack.c.h.b16 %v39
  %v118 = vunpack.c.l.b16 %v40
  %v119 = vunpack.c.l.b16 %v41
  %v120 = vunpack.c.h.b16 %v41
  %v121 = vunpack.c.l.b16 %v42
  %v122 = vunpack.c.l.b16 %v43
  %v123 = vunpack.c.h.b16 %v43
  %v124 = vunpack.c.l.b16 %v44
  %v125 = vunpack.c.l.b16 %v45
  %v126 = vunpack.c.h.b16 %v45
  %v127 = vunpack.c.l.b16 %v46
  %v128 = vunpack.c.l.b16 %v47
  %v129 = vunpack.c.h.b16 %v47
  %v130 = vunpack.c.l.b16 %v48
  %v131 = vunpack.c.l.b16 %v49
  %v132 = vunpack.c.h.b16 %v49
  %v133 = vunpack.c.l.b16 %v50
  %v134 = vunpack.c.l.b16 %v51
  %v135 = vunpack.c.h.b16 %v51
  %v136 = vunpack.c.l.b16 %v52
  %v137 = vunpack.c.l.b16 %v53
  %v138 = vunpack.c.h.b16 %v53
  %v139 = vunpack.c.l.b16 %v54
  %v140 = vunpack.c.l.b16 %v55
  %v141 = vunpack.c.h.b16 %v55
  %v142 = vunpack.c.l.b16 %v56
  %v143 = vpack.c.b16 %v98, %v95
  %v144 = vpack.c.b16 %v99, %v96
  %v145 = vpack.c.b16 %v100, %v97
  %v146 = vpack.c.b16 %v104, %v101
  %v147 = vpack.c.b16 %v105, %v102
  %v148 = vpack.c.b16 %v106, %v103
  %v149 = vpack.c.b16 %v110, %v107
  %v150 = vpack.c.b16 %v111, %v108
  %v151 = vpack.c.b16 %v112, %v109
  %v152 = vpack.c.b16 %v116, %v113
  %v153 = vpack.c.b16 %v117, %v114
  %v154 = vpack.c.b16 %v118, %v115
  %v155 = vpack.c.b16 %v122, %v119
  %v156 = vpack.c.b16 %v123, %v120
  %v157 = vpack.c.b16 %v124, %v121
  %v158 = vpack.c.b16 %v128, %v125
  %v159 = vpack.c.b16 %v129, %v126
  %v160 = vpack.c.b16 %v130, %v127
  %v161 = vpack.c.b16 %v134, %v131
  %v162 = vpack.c.b16 %v135, %v132
  %v163 = vpack.c.b16 %v136, %v133
  %v164 = vpack.c.b16 %v140, %v137
  %v165 = vpack.c.b16 %v141, %v138
  %v166 = vpack.c.b16 %v142, %v139
  %191 = vmatpush.bf16.msra.mxu0 %v164
  %192 = vmatpush.bf16.msra.mxu0 %v161
  %193 = vmatpush.bf16.msra.mxu0 %v158
  %194 = vmatpush.bf16.msra.mxu0 %v155
  %195 = vmatpush.bf16.msra.mxu0 %v152
  %196 = vmatpush.bf16.msra.mxu0 %v149
  %197 = vmatpush.bf16.msra.mxu0 %v146
  %198 = vmatpush.bf16.msra.mxu0 %v143
  %199 = vmatmul.bf16.gmra.mxu0 %v62
  %v200 = vpop.f32.mrf.mxu0
  %v201 = vadd.f32 0.0, %v200
  %v202 = vpop.f32.mrf.mxu0
  %203 = vdwg.mxu0
  %204 = vmatpush.bf16.msra.mxu0 %v165
  %205 = vmatpush.bf16.msra.mxu0 %v162
  %206 = vmatpush.bf16.msra.mxu0 %v159
  %207 = vmatpush.bf16.msra.mxu0 %v156
  %208 = vmatpush.bf16.msra.mxu0 %v153
  %209 = vmatpush.bf16.msra.mxu0 %v150
  %210 = vmatpush.bf16.msra.mxu0 %v147
  %211 = vmatpush.bf16.msra.mxu0 %v144
  %212 = vmatmul.bf16.gmra.mxu0 %v62
  %v213 = vpop.f32.mrf.mxu0
  %v214 = vadd.f32 0.0, %v213
  %v215 = vpop.f32.mrf.mxu0
  %216 = vdwg.mxu0
  %217 = vmatpush.bf16.msra.mxu0 %v166
  %218 = vmatpush.bf16.msra.mxu0 %v163
  %219 = vmatpush.bf16.msra.mxu0 %v160
  %220 = vmatpush.bf16.msra.mxu0 %v157
  %221 = vmatpush.bf16.msra.mxu0 %v154
  %222 = vmatpush.bf16.msra.mxu0 %v151
  %223 = vmatpush.bf16.msra.mxu0 %v148
  %224 = vmatpush.bf16.msra.mxu0 %v145
  %225 = vmatmul.bf16.gmra.mxu0 %v62
  %v226 = vpop.f32.mrf.mxu0
  %v227 = vadd.f32 0.0, %v226
  %v228 = vpop.f32.mrf.mxu0
  %229 = vdwg.mxu0
  %v230 = vadd.f32 %v59, %v201
  %v231 = vxor.u32 %v230, 2147483648
  %v232 = vmul.f32 %v231, 1.442695
  %v233 = vpow.pop %v232
  %v234 = vadd.f32 %v233, 1.0
  %v235 = vrcp.pop %v234
  %v236 = vmul.f32 %v234, %v235
  %v237 = vsub.f32 1.0, %v236
  %v238 = vmul.f32 %v235, %v237
  %v239 = vadd.f32 %v235, %v238
  %vm240 = vweird.f32 %v234
  %vm241 = vweird.f32 %v235
  %vm242 = vmor %vm240, %vm241
  %v243 = vsel %vm242, %v235, %v239
  %v244 = vand.u32 2147483647, %v234
  %vm245 = vcmp.eq.f32.partialorder %v244, 8.507059e+37
  %v246 = vand.u32 %v234, 2147483648
  %v247 = vor.u32 1.1754944e-38, %v246
  %v248 = vsel %vm245, %v247, %v243
  %v249 = vmul.f32 1.0, %v248
  %v250 = vadd.f32 %v60, %v214
  %v251 = vxor.u32 %v250, 2147483648
  %v252 = vmul.f32 %v251, 1.442695
  %v253 = vpow.pop %v252
  %v254 = vadd.f32 %v253, 1.0
  %v255 = vrcp.pop %v254
  %v256 = vmul.f32 %v254, %v255
  %v257 = vsub.f32 1.0, %v256
  %v258 = vmul.f32 %v255, %v257
  %v259 = vadd.f32 %v255, %v258
  %vm260 = vweird.f32 %v254
  %vm261 = vweird.f32 %v255
  %vm262 = vmor %vm260, %vm261
  %v263 = vsel %vm262, %v255, %v259
  %v264 = vand.u32 2147483647, %v254
  %vm265 = vcmp.eq.f32.partialorder %v264, 8.507059e+37
  %v266 = vand.u32 %v254, 2147483648
  %v267 = vor.u32 1.1754944e-38, %v266
  %v268 = vsel %vm265, %v267, %v263
  %v269 = vmul.f32 1.0, %v268
  %v271 = vperm.slane %v57, 0
  %v273 = vadd.f32 %v227, %v271
  %v274 = vmul.f32 %v249, %v273
  %v275 = vadd.f32 %v61, %v274
  %v276 = vtanh.pop %v275
  %v277 = vsub.f32 1.0, %v269
  %v278 = vmul.f32 %v277, %v276
  %v279 = vmul.f32 %v269, %v58
  %v280 = vadd.f32 %v278, %v279
  %281 = vst [vmem:[#allocation3] sm:$0xff] %v280
  %s282 = scalar_lea.vmem %s0, 24
  %v283 = vld [vmem:[%s282] sm:$0xff]
  %v284 = vld [vmem:[%s282 + $0x8] sm:$0xff]
  %v285 = vld [vmem:[%s282 + $0x10] sm:$0xff]
  %v286 = vpack.c.bf16 %v280, %v280
  %287 = vmatpush.bf16.msra.mxu0 %v164
  %288 = vmatpush.bf16.msra.mxu0 %v161
  %289 = vmatpush.bf16.msra.mxu0 %v158
  %290 = vmatpush.bf16.msra.mxu0 %v155
  %291 = vmatpush.bf16.msra.mxu0 %v152
  %292 = vmatpush.bf16.msra.mxu0 %v149
  %293 = vmatpush.bf16.msra.mxu0 %v146
  %294 = vmatpush.bf16.msra.mxu0 %v143
  %295 = vmatmul.bf16.gmra.mxu0 %v286
  %v296 = vpop.f32.mrf.mxu0
  %v297 = vadd.f32 0.0, %v296
  %v298 = vpop.f32.mrf.mxu0
  %299 = vdwg.mxu0
  %300 = vmatpush.bf16.msra.mxu0 %v165
  %301 = vmatpush.bf16.msra.mxu0 %v162
  %302 = vmatpush.bf16.msra.mxu0 %v159
  %303 = vmatpush.bf16.msra.mxu0 %v156
  %304 = vmatpush.bf16.msra.mxu0 %v153
  %305 = vmatpush.bf16.msra.mxu0 %v150
  %306 = vmatpush.bf16.msra.mxu0 %v147
  %307 = vmatpush.bf16.msra.mxu0 %v144
  %308 = vmatmul.bf16.gmra.mxu0 %v286
  %v309 = vpop.f32.mrf.mxu0
  %v310 = vadd.f32 0.0, %v309
  %v311 = vpop.f32.mrf.mxu0
  %312 = vdwg.mxu0
  %313 = vmatpush.bf16.msra.mxu0 %v166
  %314 = vmatpush.bf16.msra.mxu0 %v163
  %315 = vmatpush.bf16.msra.mxu0 %v160
  %316 = vmatpush.bf16.msra.mxu0 %v157
  %317 = vmatpush.bf16.msra.mxu0 %v154
  %318 = vmatpush.bf16.msra.mxu0 %v151
  %319 = vmatpush.bf16.msra.mxu0 %v148
  %320 = vmatpush.bf16.msra.mxu0 %v145
  %321 = vmatmul.bf16.gmra.mxu0 %v286
  %v322 = vpop.f32.mrf.mxu0
  %v323 = vadd.f32 0.0, %v322
  %v324 = vpop.f32.mrf.mxu0
  %325 = vdwg.mxu0
  %v326 = vadd.f32 %v283, %v297
  %v327 = vxor.u32 %v326, 2147483648
  %v328 = vmul.f32 %v327, 1.442695
  %v329 = vpow.pop %v328
  %v330 = vadd.f32 %v329, 1.0
  %v331 = vrcp.pop %v330
  %v332 = vmul.f32 %v330, %v331
  %v333 = vsub.f32 1.0, %v332
  %v334 = vmul.f32 %v331, %v333
  %v335 = vadd.f32 %v331, %v334
  %vm336 = vweird.f32 %v330
  %vm337 = vweird.f32 %v331
  %vm338 = vmor %vm336, %vm337
  %v339 = vsel %vm338, %v331, %v335
  %v340 = vand.u32 2147483647, %v330
  %vm341 = vcmp.eq.f32.partialorder %v340, 8.507059e+37
  %v342 = vand.u32 %v330, 2147483648
  %v343 = vor.u32 1.1754944e-38, %v342
  %v344 = vsel %vm341, %v343, %v339
  %v345 = vmul.f32 1.0, %v344
  %v346 = vadd.f32 %v284, %v310
  %v347 = vxor.u32 %v346, 2147483648
  %v348 = vmul.f32 %v347, 1.442695
  %v349 = vpow.pop %v348
  %v350 = vadd.f32 %v349, 1.0
  %v351 = vrcp.pop %v350
  %v352 = vmul.f32 %v350, %v351
  %v353 = vsub.f32 1.0, %v352
  %v354 = vmul.f32 %v351, %v353
  %v355 = vadd.f32 %v351, %v354
  %vm356 = vweird.f32 %v350
  %vm357 = vweird.f32 %v351
  %vm358 = vmor %vm356, %vm357
  %v359 = vsel %vm358, %v351, %v355
  %v360 = vand.u32 2147483647, %v350
  %vm361 = vcmp.eq.f32.partialorder %v360, 8.507059e+37
  %v362 = vand.u32 %v350, 2147483648
  %v363 = vor.u32 1.1754944e-38, %v362
  %v364 = vsel %vm361, %v363, %v359
  %v365 = vmul.f32 1.0, %v364
  %v366 = vadd.f32 %v323, %v271
  %v367 = vmul.f32 %v345, %v366
  %v368 = vadd.f32 %v285, %v367
  %v369 = vtanh.pop %v368
  %v370 = vsub.f32 1.0, %v365
  %v371 = vmul.f32 %v370, %v369
  %v372 = vmul.f32 %v365, %v280
  %v373 = vadd.f32 %v371, %v372
  %s374 = scalar_lea.vmem [#allocation3], 8
  %375 = vst [vmem:[%s374] sm:$0xff] %v373
  %s376 = scalar_lea.vmem %s0, 48
  %v377 = vld [vmem:[%s376] sm:$0xff]
  %v378 = vld [vmem:[%s376 + $0x8] sm:$0xff]
  %v379 = vld [vmem:[%s376 + $0x10] sm:$0xff]
  %v380 = vpack.c.bf16 %v373, %v373
  %381 = vmatpush.bf16.msra.mxu0 %v164
  %382 = vmatpush.bf16.msra.mxu0 %v161
  %383 = vmatpush.bf16.msra.mxu0 %v158
  %384 = vmatpush.bf16.msra.mxu0 %v155
  %385 = vmatpush.bf16.msra.mxu0 %v152
  %386 = vmatpush.bf16.msra.mxu0 %v149
  %387 = vmatpush.bf16.msra.mxu0 %v146
  %388 = vmatpush.bf16.msra.mxu0 %v143
  %389 = vmatmul.bf16.gmra.mxu0 %v380
  %v390 = vpop.f32.mrf.mxu0
  %v391 = vadd.f32 0.0, %v390
  %v392 = vpop.f32.mrf.mxu0
  %393 = vdwg.mxu0
  %394 = vmatpush.bf16.msra.mxu0 %v165
  %395 = vmatpush.bf16.msra.mxu0 %v162
  %396 = vmatpush.bf16.msra.mxu0 %v159
  %397 = vmatpush.bf16.msra.mxu0 %v156
  %398 = vmatpush.bf16.msra.mxu0 %v153
  %399 = vmatpush.bf16.msra.mxu0 %v150
  %400 = vmatpush.bf16.msra.mxu0 %v147
  %401 = vmatpush.bf16.msra.mxu0 %v144
  %402 = vmatmul.bf16.gmra.mxu0 %v380
  %v403 = vpop.f32.mrf.mxu0
  %v404 = vadd.f32 0.0, %v403
  %v405 = vpop.f32.mrf.mxu0
  %406 = vdwg.mxu0
  %407 = vmatpush.bf16.msra.mxu0 %v166
  %408 = vmatpush.bf16.msra.mxu0 %v163
  %409 = vmatpush.bf16.msra.mxu0 %v160
  %410 = vmatpush.bf16.msra.mxu0 %v157
  %411 = vmatpush.bf16.msra.mxu0 %v154
  %412 = vmatpush.bf16.msra.mxu0 %v151
  %413 = vmatpush.bf16.msra.mxu0 %v148
  %414 = vmatpush.bf16.msra.mxu0 %v145
  %415 = vmatmul.bf16.gmra.mxu0 %v380
  %v416 = vpop.f32.mrf.mxu0
  %v417 = vadd.f32 0.0, %v416
  %v418 = vpop.f32.mrf.mxu0
  %419 = vdwg.mxu0
  %v420 = vadd.f32 %v377, %v391
  %v421 = vxor.u32 %v420, 2147483648
  %v422 = vmul.f32 %v421, 1.442695
  %v423 = vpow.pop %v422
  %v424 = vadd.f32 %v423, 1.0
  %v425 = vrcp.pop %v424
  %v426 = vmul.f32 %v424, %v425
  %v427 = vsub.f32 1.0, %v426
  %v428 = vmul.f32 %v425, %v427
  %v429 = vadd.f32 %v425, %v428
  %vm430 = vweird.f32 %v424
  %vm431 = vweird.f32 %v425
  %vm432 = vmor %vm430, %vm431
  %v433 = vsel %vm432, %v425, %v429
  %v434 = vand.u32 2147483647, %v424
  %vm435 = vcmp.eq.f32.partialorder %v434, 8.507059e+37
  %v436 = vand.u32 %v424, 2147483648
  %v437 = vor.u32 1.1754944e-38, %v436
  %v438 = vsel %vm435, %v437, %v433
  %v439 = vmul.f32 1.0, %v438
  %v440 = vadd.f32 %v378, %v404
  %v441 = vxor.u32 %v440, 2147483648
  %v442 = vmul.f32 %v441, 1.442695
  %v443 = vpow.pop %v442
  %v444 = vadd.f32 %v443, 1.0
  %v445 = vrcp.pop %v444
  %v446 = vmul.f32 %v444, %v445
  %v447 = vsub.f32 1.0, %v446
  %v448 = vmul.f32 %v445, %v447
  %v449 = vadd.f32 %v445, %v448
  %vm450 = vweird.f32 %v444
  %vm451 = vweird.f32 %v445
  %vm452 = vmor %vm450, %vm451
  %v453 = vsel %vm452, %v445, %v449
  %v454 = vand.u32 2147483647, %v444
  %vm455 = vcmp.eq.f32.partialorder %v454, 8.507059e+37
  %v456 = vand.u32 %v444, 2147483648
  %v457 = vor.u32 1.1754944e-38, %v456
  %v458 = vsel %vm455, %v457, %v453
  %v459 = vmul.f32 1.0, %v458
  %v460 = vadd.f32 %v417, %v271
  %v461 = vmul.f32 %v439, %v460
  %v462 = vadd.f32 %v379, %v461
  %v463 = vtanh.pop %v462
  %v464 = vsub.f32 1.0, %v459
  %v465 = vmul.f32 %v464, %v463
  %v466 = vmul.f32 %v459, %v373
  %v467 = vadd.f32 %v465, %v466
  %s468 = scalar_lea.vmem [#allocation3], 16
  %469 = vst [vmem:[%s468] sm:$0xff] %v467
  %s470 = scalar_lea.vmem %s0, 72
  %v471 = vld [vmem:[%s470] sm:$0xff]
  %v472 = vld [vmem:[%s470 + $0x8] sm:$0xff]
  %v473 = vld [vmem:[%s470 + $0x10] sm:$0xff]
  %v474 = vpack.c.bf16 %v467, %v467
  %475 = vmatpush.bf16.msra.mxu0 %v164
  %476 = vmatpush.bf16.msra.mxu0 %v161
  %477 = vmatpush.bf16.msra.mxu0 %v158
  %478 = vmatpush.bf16.msra.mxu0 %v155
  %479 = vmatpush.bf16.msra.mxu0 %v152
  %480 = vmatpush.bf16.msra.mxu0 %v149
  %481 = vmatpush.bf16.msra.mxu0 %v146
  %482 = vmatpush.bf16.msra.mxu0 %v143
  %483 = vmatmul.bf16.gmra.mxu0 %v474
  %v484 = vpop.f32.mrf.mxu0
  %v485 = vadd.f32 0.0, %v484
  %v486 = vpop.f32.mrf.mxu0
  %487 = vdwg.mxu0
  %488 = vmatpush.bf16.msra.mxu0 %v165
  %489 = vmatpush.bf16.msra.mxu0 %v162
  %490 = vmatpush.bf16.msra.mxu0 %v159
  %491 = vmatpush.bf16.msra.mxu0 %v156
  %492 = vmatpush.bf16.msra.mxu0 %v153
  %493 = vmatpush.bf16.msra.mxu0 %v150
  %494 = vmatpush.bf16.msra.mxu0 %v147
  %495 = vmatpush.bf16.msra.mxu0 %v144
  %496 = vmatmul.bf16.gmra.mxu0 %v474
  %v497 = vpop.f32.mrf.mxu0
  %v498 = vadd.f32 0.0, %v497
  %v499 = vpop.f32.mrf.mxu0
  %500 = vdwg.mxu0
  %501 = vmatpush.bf16.msra.mxu0 %v166
  %502 = vmatpush.bf16.msra.mxu0 %v163
  %503 = vmatpush.bf16.msra.mxu0 %v160
  %504 = vmatpush.bf16.msra.mxu0 %v157
  %505 = vmatpush.bf16.msra.mxu0 %v154
  %506 = vmatpush.bf16.msra.mxu0 %v151
  %507 = vmatpush.bf16.msra.mxu0 %v148
  %508 = vmatpush.bf16.msra.mxu0 %v145
  %509 = vmatmul.bf16.gmra.mxu0 %v474
  %v510 = vpop.f32.mrf.mxu0
  %v511 = vadd.f32 0.0, %v510
  %v512 = vpop.f32.mrf.mxu0
  %513 = vdwg.mxu0
  %v514 = vadd.f32 %v471, %v485
  %v515 = vxor.u32 %v514, 2147483648
  %v516 = vmul.f32 %v515, 1.442695
  %v517 = vpow.pop %v516
  %v518 = vadd.f32 %v517, 1.0
  %v519 = vrcp.pop %v518
  %v520 = vmul.f32 %v518, %v519
  %v521 = vsub.f32 1.0, %v520
  %v522 = vmul.f32 %v519, %v521
  %v523 = vadd.f32 %v519, %v522
  %vm524 = vweird.f32 %v518
  %vm525 = vweird.f32 %v519
  %vm526 = vmor %vm524, %vm525
  %v527 = vsel %vm526, %v519, %v523
  %v528 = vand.u32 2147483647, %v518
  %vm529 = vcmp.eq.f32.partialorder %v528, 8.507059e+37
  %v530 = vand.u32 %v518, 2147483648
  %v531 = vor.u32 1.1754944e-38, %v530
  %v532 = vsel %vm529, %v531, %v527
  %v533 = vmul.f32 1.0, %v532
  %v534 = vadd.f32 %v472, %v498
  %v535 = vxor.u32 %v534, 2147483648
  %v536 = vmul.f32 %v535, 1.442695
  %v537 = vpow.pop %v536
  %v538 = vadd.f32 %v537, 1.0
  %v539 = vrcp.pop %v538
  %v540 = vmul.f32 %v538, %v539
  %v541 = vsub.f32 1.0, %v540
  %v542 = vmul.f32 %v539, %v541
  %v543 = vadd.f32 %v539, %v542
  %vm544 = vweird.f32 %v538
  %vm545 = vweird.f32 %v539
  %vm546 = vmor %vm544, %vm545
  %v547 = vsel %vm546, %v539, %v543
  %v548 = vand.u32 2147483647, %v538
  %vm549 = vcmp.eq.f32.partialorder %v548, 8.507059e+37
  %v550 = vand.u32 %v538, 2147483648
  %v551 = vor.u32 1.1754944e-38, %v550
  %v552 = vsel %vm549, %v551, %v547
  %v553 = vmul.f32 1.0, %v552
  %v554 = vadd.f32 %v511, %v271
  %v555 = vmul.f32 %v533, %v554
  %v556 = vadd.f32 %v473, %v555
  %v557 = vtanh.pop %v556
  %v558 = vsub.f32 1.0, %v553
  %v559 = vmul.f32 %v558, %v557
  %v560 = vmul.f32 %v553, %v467
  %v561 = vadd.f32 %v559, %v560
  %s562 = scalar_lea.vmem [#allocation3], 24
  %563 = vst [vmem:[%s562] sm:$0xff] %v561
  %s564 = scalar_lea.vmem %s0, 96
  %v565 = vld [vmem:[%s564] sm:$0xff]
  %v566 = vld [vmem:[%s564 + $0x8] sm:$0xff]
  %v567 = vld [vmem:[%s564 + $0x10] sm:$0xff]
  %v568 = vpack.c.bf16 %v561, %v561
  %569 = vmatpush.bf16.msra.mxu0 %v164
  %570 = vmatpush.bf16.msra.mxu0 %v161
  %571 = vmatpush.bf16.msra.mxu0 %v158
  %572 = vmatpush.bf16.msra.mxu0 %v155
  %573 = vmatpush.bf16.msra.mxu0 %v152
  %574 = vmatpush.bf16.msra.mxu0 %v149
  %575 = vmatpush.bf16.msra.mxu0 %v146
  %576 = vmatpush.bf16.msra.mxu0 %v143
  %577 = vmatmul.bf16.gmra.mxu0 %v568
  %v578 = vpop.f32.mrf.mxu0
  %v579 = vadd.f32 0.0, %v578
  %v580 = vpop.f32.mrf.mxu0
  %581 = vdwg.mxu0
  %582 = vmatpush.bf16.msra.mxu0 %v165
  %583 = vmatpush.bf16.msra.mxu0 %v162
  %584 = vmatpush.bf16.msra.mxu0 %v159
  %585 = vmatpush.bf16.msra.mxu0 %v156
  %586 = vmatpush.bf16.msra.mxu0 %v153
  %587 = vmatpush.bf16.msra.mxu0 %v150
  %588 = vmatpush.bf16.msra.mxu0 %v147
  %589 = vmatpush.bf16.msra.mxu0 %v144
  %590 = vmatmul.bf16.gmra.mxu0 %v568
  %v591 = vpop.f32.mrf.mxu0
  %v592 = vadd.f32 0.0, %v591
  %v593 = vpop.f32.mrf.mxu0
  %594 = vdwg.mxu0
  %595 = vmatpush.bf16.msra.mxu0 %v166
  %596 = vmatpush.bf16.msra.mxu0 %v163
  %597 = vmatpush.bf16.msra.mxu0 %v160
  %598 = vmatpush.bf16.msra.mxu0 %v157
  %599 = vmatpush.bf16.msra.mxu0 %v154
  %600 = vmatpush.bf16.msra.mxu0 %v151
  %601 = vmatpush.bf16.msra.mxu0 %v148
  %602 = vmatpush.bf16.msra.mxu0 %v145
  %603 = vmatmul.bf16.gmra.mxu0 %v568
  %v604 = vpop.f32.mrf.mxu0
  %v605 = vadd.f32 0.0, %v604
  %v606 = vpop.f32.mrf.mxu0
  %607 = vdwg.mxu0
  %v608 = vadd.f32 %v565, %v579
  %v609 = vxor.u32 %v608, 2147483648
  %v610 = vmul.f32 %v609, 1.442695
  %v611 = vpow.pop %v610
  %v612 = vadd.f32 %v611, 1.0
  %v613 = vrcp.pop %v612
  %v614 = vmul.f32 %v612, %v613
  %v615 = vsub.f32 1.0, %v614
  %v616 = vmul.f32 %v613, %v615
  %v617 = vadd.f32 %v613, %v616
  %vm618 = vweird.f32 %v612
  %vm619 = vweird.f32 %v613
  %vm620 = vmor %vm618, %vm619
  %v621 = vsel %vm620, %v613, %v617
  %v622 = vand.u32 2147483647, %v612
  %vm623 = vcmp.eq.f32.partialorder %v622, 8.507059e+37
  %v624 = vand.u32 %v612, 2147483648
  %v625 = vor.u32 1.1754944e-38, %v624
  %v626 = vsel %vm623, %v625, %v621
  %v627 = vmul.f32 1.0, %v626
  %v628 = vadd.f32 %v566, %v592
  %v629 = vxor.u32 %v628, 2147483648
  %v630 = vmul.f32 %v629, 1.442695
  %v631 = vpow.pop %v630
  %v632 = vadd.f32 %v631, 1.0
  %v633 = vrcp.pop %v632
  %v634 = vmul.f32 %v632, %v633
  %v635 = vsub.f32 1.0, %v634
  %v636 = vmul.f32 %v633, %v635
  %v637 = vadd.f32 %v633, %v636
  %vm638 = vweird.f32 %v632
  %vm639 = vweird.f32 %v633
  %vm640 = vmor %vm638, %vm639
  %v641 = vsel %vm640, %v633, %v637
  %v642 = vand.u32 2147483647, %v632
  %vm643 = vcmp.eq.f32.partialorder %v642, 8.507059e+37
  %v644 = vand.u32 %v632, 2147483648
  %v645 = vor.u32 1.1754944e-38, %v644
  %v646 = vsel %vm643, %v645, %v641
  %v647 = vmul.f32 1.0, %v646
  %v648 = vadd.f32 %v605, %v271
  %v649 = vmul.f32 %v627, %v648
  %v650 = vadd.f32 %v567, %v649
  %v651 = vtanh.pop %v650
  %v652 = vsub.f32 1.0, %v647
  %v653 = vmul.f32 %v652, %v651
  %v654 = vmul.f32 %v647, %v561
  %v655 = vadd.f32 %v653, %v654
  %s656 = scalar_lea.vmem [#allocation3], 32
  %657 = vst [vmem:[%s656] sm:$0xff] %v655
  %s658 = scalar_lea.vmem %s0, 120
  %v659 = vld [vmem:[%s658] sm:$0xff]
  %v660 = vld [vmem:[%s658 + $0x8] sm:$0xff]
  %v661 = vld [vmem:[%s658 + $0x10] sm:$0xff]
  %v662 = vpack.c.bf16 %v655, %v655
  %663 = vmatpush.bf16.msra.mxu0 %v164
  %664 = vmatpush.bf16.msra.mxu0 %v161
  %665 = vmatpush.bf16.msra.mxu0 %v158
  %666 = vmatpush.bf16.msra.mxu0 %v155
  %667 = vmatpush.bf16.msra.mxu0 %v152
  %668 = vmatpush.bf16.msra.mxu0 %v149
  %669 = vmatpush.bf16.msra.mxu0 %v146
  %670 = vmatpush.bf16.msra.mxu0 %v143
  %671 = vmatmul.bf16.gmra.mxu0 %v662
  %v672 = vpop.f32.mrf.mxu0
  %v673 = vadd.f32 0.0, %v672
  %v674 = vpop.f32.mrf.mxu0
  %675 = vdwg.mxu0
  %676 = vmatpush.bf16.msra.mxu0 %v165
  %677 = vmatpush.bf16.msra.mxu0 %v162
  %678 = vmatpush.bf16.msra.mxu0 %v159
  %679 = vmatpush.bf16.msra.mxu0 %v156
  %680 = vmatpush.bf16.msra.mxu0 %v153
  %681 = vmatpush.bf16.msra.mxu0 %v150
  %682 = vmatpush.bf16.msra.mxu0 %v147
  %683 = vmatpush.bf16.msra.mxu0 %v144
  %684 = vmatmul.bf16.gmra.mxu0 %v662
  %v685 = vpop.f32.mrf.mxu0
  %v686 = vadd.f32 0.0, %v685
  %v687 = vpop.f32.mrf.mxu0
  %688 = vdwg.mxu0
  %689 = vmatpush.bf16.msra.mxu0 %v166
  %690 = vmatpush.bf16.msra.mxu0 %v163
  %691 = vmatpush.bf16.msra.mxu0 %v160
  %692 = vmatpush.bf16.msra.mxu0 %v157
  %693 = vmatpush.bf16.msra.mxu0 %v154
  %694 = vmatpush.bf16.msra.mxu0 %v151
  %695 = vmatpush.bf16.msra.mxu0 %v148
  %696 = vmatpush.bf16.msra.mxu0 %v145
  %697 = vmatmul.bf16.gmra.mxu0 %v662
  %v698 = vpop.f32.mrf.mxu0
  %v699 = vadd.f32 0.0, %v698
  %v700 = vpop.f32.mrf.mxu0
  %701 = vdwg.mxu0
  %v702 = vadd.f32 %v659, %v673
  %v703 = vxor.u32 %v702, 2147483648
  %v704 = vmul.f32 %v703, 1.442695
  %v705 = vpow.pop %v704
  %v706 = vadd.f32 %v705, 1.0
  %v707 = vrcp.pop %v706
  %v708 = vmul.f32 %v706, %v707
  %v709 = vsub.f32 1.0, %v708
  %v710 = vmul.f32 %v707, %v709
  %v711 = vadd.f32 %v707, %v710
  %vm712 = vweird.f32 %v706
  %vm713 = vweird.f32 %v707
  %vm714 = vmor %vm712, %vm713
  %v715 = vsel %vm714, %v707, %v711
  %v716 = vand.u32 2147483647, %v706
  %vm717 = vcmp.eq.f32.partialorder %v716, 8.507059e+37
  %v718 = vand.u32 %v706, 2147483648
  %v719 = vor.u32 1.1754944e-38, %v718
  %v720 = vsel %vm717, %v719, %v715
  %v721 = vmul.f32 1.0, %v720
  %v722 = vadd.f32 %v660, %v686
  %v723 = vxor.u32 %v722, 2147483648
  %v724 = vmul.f32 %v723, 1.442695
  %v725 = vpow.pop %v724
  %v726 = vadd.f32 %v725, 1.0
  %v727 = vrcp.pop %v726
  %v728 = vmul.f32 %v726, %v727
  %v729 = vsub.f32 1.0, %v728
  %v730 = vmul.f32 %v727, %v729
  %v731 = vadd.f32 %v727, %v730
  %vm732 = vweird.f32 %v726
  %vm733 = vweird.f32 %v727
  %vm734 = vmor %vm732, %vm733
  %v735 = vsel %vm734, %v727, %v731
  %v736 = vand.u32 2147483647, %v726
  %vm737 = vcmp.eq.f32.partialorder %v736, 8.507059e+37
  %v738 = vand.u32 %v726, 2147483648
  %v739 = vor.u32 1.1754944e-38, %v738
  %v740 = vsel %vm737, %v739, %v735
  %v741 = vmul.f32 1.0, %v740
  %v742 = vadd.f32 %v699, %v271
  %v743 = vmul.f32 %v721, %v742
  %v744 = vadd.f32 %v661, %v743
  %v745 = vtanh.pop %v744
  %v746 = vsub.f32 1.0, %v741
  %v747 = vmul.f32 %v746, %v745
  %v748 = vmul.f32 %v741, %v655
  %v749 = vadd.f32 %v747, %v748
  %s750 = scalar_lea.vmem [#allocation3], 40
  %751 = vst [vmem:[%s750] sm:$0xff] %v749
  %s752 = scalar_lea.vmem %s0, 144
  %v753 = vld [vmem:[%s752] sm:$0xff]
  %v754 = vld [vmem:[%s752 + $0x8] sm:$0xff]
  %v755 = vld [vmem:[%s752 + $0x10] sm:$0xff]
  %v756 = vpack.c.bf16 %v749, %v749
  %757 = vmatpush.bf16.msra.mxu0 %v164
  %758 = vmatpush.bf16.msra.mxu0 %v161
  %759 = vmatpush.bf16.msra.mxu0 %v158
  %760 = vmatpush.bf16.msra.mxu0 %v155
  %761 = vmatpush.bf16.msra.mxu0 %v152
  %762 = vmatpush.bf16.msra.mxu0 %v149
  %763 = vmatpush.bf16.msra.mxu0 %v146
  %764 = vmatpush.bf16.msra.mxu0 %v143
  %765 = vmatmul.bf16.gmra.mxu0 %v756
  %v766 = vpop.f32.mrf.mxu0
  %v767 = vadd.f32 0.0, %v766
  %v768 = vpop.f32.mrf.mxu0
  %769 = vdwg.mxu0
  %770 = vmatpush.bf16.msra.mxu0 %v165
  %771 = vmatpush.bf16.msra.mxu0 %v162
  %772 = vmatpush.bf16.msra.mxu0 %v159
  %773 = vmatpush.bf16.msra.mxu0 %v156
  %774 = vmatpush.bf16.msra.mxu0 %v153
  %775 = vmatpush.bf16.msra.mxu0 %v150
  %776 = vmatpush.bf16.msra.mxu0 %v147
  %777 = vmatpush.bf16.msra.mxu0 %v144
  %778 = vmatmul.bf16.gmra.mxu0 %v756
  %v779 = vpop.f32.mrf.mxu0
  %v780 = vadd.f32 0.0, %v779
  %v781 = vpop.f32.mrf.mxu0
  %782 = vdwg.mxu0
  %783 = vmatpush.bf16.msra.mxu0 %v166
  %784 = vmatpush.bf16.msra.mxu0 %v163
  %785 = vmatpush.bf16.msra.mxu0 %v160
  %786 = vmatpush.bf16.msra.mxu0 %v157
  %787 = vmatpush.bf16.msra.mxu0 %v154
  %788 = vmatpush.bf16.msra.mxu0 %v151
  %789 = vmatpush.bf16.msra.mxu0 %v148
  %790 = vmatpush.bf16.msra.mxu0 %v145
  %791 = vmatmul.bf16.gmra.mxu0 %v756
  %v792 = vpop.f32.mrf.mxu0
  %v793 = vadd.f32 0.0, %v792
  %v794 = vpop.f32.mrf.mxu0
  %795 = vdwg.mxu0
  %v796 = vadd.f32 %v753, %v767
  %v797 = vxor.u32 %v796, 2147483648
  %v798 = vmul.f32 %v797, 1.442695
  %v799 = vpow.pop %v798
  %v800 = vadd.f32 %v799, 1.0
  %v801 = vrcp.pop %v800
  %v802 = vmul.f32 %v800, %v801
  %v803 = vsub.f32 1.0, %v802
  %v804 = vmul.f32 %v801, %v803
  %v805 = vadd.f32 %v801, %v804
  %vm806 = vweird.f32 %v800
  %vm807 = vweird.f32 %v801
  %vm808 = vmor %vm806, %vm807
  %v809 = vsel %vm808, %v801, %v805
  %v810 = vand.u32 2147483647, %v800
  %vm811 = vcmp.eq.f32.partialorder %v810, 8.507059e+37
  %v812 = vand.u32 %v800, 2147483648
  %v813 = vor.u32 1.1754944e-38, %v812
  %v814 = vsel %vm811, %v813, %v809
  %v815 = vmul.f32 1.0, %v814
  %v816 = vadd.f32 %v754, %v780
  %v817 = vxor.u32 %v816, 2147483648
  %v818 = vmul.f32 %v817, 1.442695
  %v819 = vpow.pop %v818
  %v820 = vadd.f32 %v819, 1.0
  %v821 = vrcp.pop %v820
  %v822 = vmul.f32 %v820, %v821
  %v823 = vsub.f32 1.0, %v822
  %v824 = vmul.f32 %v821, %v823
  %v825 = vadd.f32 %v821, %v824
  %vm826 = vweird.f32 %v820
  %vm827 = vweird.f32 %v821
  %vm828 = vmor %vm826, %vm827
  %v829 = vsel %vm828, %v821, %v825
  %v830 = vand.u32 2147483647, %v820
  %vm831 = vcmp.eq.f32.partialorder %v830, 8.507059e+37
  %v832 = vand.u32 %v820, 2147483648
  %v833 = vor.u32 1.1754944e-38, %v832
  %v834 = vsel %vm831, %v833, %v829
  %v835 = vmul.f32 1.0, %v834
  %v836 = vadd.f32 %v793, %v271
  %v837 = vmul.f32 %v815, %v836
  %v838 = vadd.f32 %v755, %v837
  %v839 = vtanh.pop %v838
  %v840 = vsub.f32 1.0, %v835
  %v841 = vmul.f32 %v840, %v839
  %v842 = vmul.f32 %v835, %v749
  %v843 = vadd.f32 %v841, %v842
  %s844 = scalar_lea.vmem [#allocation3], 48
  %845 = vst [vmem:[%s844] sm:$0xff] %v843
  %s846 = scalar_lea.vmem %s0, 168
  %v847 = vld [vmem:[%s846] sm:$0xff]
  %v848 = vld [vmem:[%s846 + $0x8] sm:$0xff]
  %v849 = vld [vmem:[%s846 + $0x10] sm:$0xff]
  %v850 = vpack.c.bf16 %v843, %v843
  %851 = vmatpush.bf16.msra.mxu0 %v164
  %852 = vmatpush.bf16.msra.mxu0 %v161
  %853 = vmatpush.bf16.msra.mxu0 %v158
  %854 = vmatpush.bf16.msra.mxu0 %v155
  %855 = vmatpush.bf16.msra.mxu0 %v152
  %856 = vmatpush.bf16.msra.mxu0 %v149
  %857 = vmatpush.bf16.msra.mxu0 %v146
  %858 = vmatpush.bf16.msra.mxu0 %v143
  %859 = vmatmul.bf16.gmra.mxu0 %v850
  %v860 = vpop.f32.mrf.mxu0
  %v861 = vadd.f32 0.0, %v860
  %v862 = vpop.f32.mrf.mxu0
  %863 = vdwg.mxu0
  %864 = vmatpush.bf16.msra.mxu0 %v165
  %865 = vmatpush.bf16.msra.mxu0 %v162
  %866 = vmatpush.bf16.msra.mxu0 %v159
  %867 = vmatpush.bf16.msra.mxu0 %v156
  %868 = vmatpush.bf16.msra.mxu0 %v153
  %869 = vmatpush.bf16.msra.mxu0 %v150
  %870 = vmatpush.bf16.msra.mxu0 %v147
  %871 = vmatpush.bf16.msra.mxu0 %v144
  %872 = vmatmul.bf16.gmra.mxu0 %v850
  %v873 = vpop.f32.mrf.mxu0
  %v874 = vadd.f32 0.0, %v873
  %v875 = vpop.f32.mrf.mxu0
  %876 = vdwg.mxu0
  %877 = vmatpush.bf16.msra.mxu0 %v166
  %878 = vmatpush.bf16.msra.mxu0 %v163
  %879 = vmatpush.bf16.msra.mxu0 %v160
  %880 = vmatpush.bf16.msra.mxu0 %v157
  %881 = vmatpush.bf16.msra.mxu0 %v154
  %882 = vmatpush.bf16.msra.mxu0 %v151
  %883 = vmatpush.bf16.msra.mxu0 %v148
  %884 = vmatpush.bf16.msra.mxu0 %v145
  %885 = vmatmul.bf16.gmra.mxu0 %v850
  %v886 = vpop.f32.mrf.mxu0
  %v887 = vadd.f32 0.0, %v886
  %v888 = vpop.f32.mrf.mxu0
  %889 = vdwg.mxu0
  %v890 = vadd.f32 %v847, %v861
  %v891 = vxor.u32 %v890, 2147483648
  %v892 = vmul.f32 %v891, 1.442695
  %v893 = vpow.pop %v892
  %v894 = vadd.f32 %v893, 1.0
  %v895 = vrcp.pop %v894
  %v896 = vmul.f32 %v894, %v895
  %v897 = vsub.f32 1.0, %v896
  %v898 = vmul.f32 %v895, %v897
  %v899 = vadd.f32 %v895, %v898
  %vm900 = vweird.f32 %v894
  %vm901 = vweird.f32 %v895
  %vm902 = vmor %vm900, %vm901
  %v903 = vsel %vm902, %v895, %v899
  %v904 = vand.u32 2147483647, %v894
  %vm905 = vcmp.eq.f32.partialorder %v904, 8.507059e+37
  %v906 = vand.u32 %v894, 2147483648
  %v907 = vor.u32 1.1754944e-38, %v906
  %v908 = vsel %vm905, %v907, %v903
  %v909 = vmul.f32 1.0, %v908
  %v910 = vadd.f32 %v848, %v874
  %v911 = vxor.u32 %v910, 2147483648
  %v912 = vmul.f32 %v911, 1.442695
  %v913 = vpow.pop %v912
  %v914 = vadd.f32 %v913, 1.0
  %v915 = vrcp.pop %v914
  %v916 = vmul.f32 %v914, %v915
  %v917 = vsub.f32 1.0, %v916
  %v918 = vmul.f32 %v915, %v917
  %v919 = vadd.f32 %v915, %v918
  %vm920 = vweird.f32 %v914
  %vm921 = vweird.f32 %v915
  %vm922 = vmor %vm920, %vm921
  %v923 = vsel %vm922, %v915, %v919
  %v924 = vand.u32 2147483647, %v914
  %vm925 = vcmp.eq.f32.partialorder %v924, 8.507059e+37
  %v926 = vand.u32 %v914, 2147483648
  %v927 = vor.u32 1.1754944e-38, %v926
  %v928 = vsel %vm925, %v927, %v923
  %v929 = vmul.f32 1.0, %v928
  %v930 = vadd.f32 %v887, %v271
  %v931 = vmul.f32 %v909, %v930
  %v932 = vadd.f32 %v849, %v931
  %v933 = vtanh.pop %v932
  %v934 = vsub.f32 1.0, %v929
  %v935 = vmul.f32 %v934, %v933
  %v936 = vmul.f32 %v929, %v843
  %v937 = vadd.f32 %v935, %v936
  %s938 = scalar_lea.vmem [#allocation3], 56
  %939 = vst [vmem:[%s938] sm:$0xff] %v937
  %940 = vst [vmem:[#allocation2] sm:$0xff] %v937
  %v941 = vld [vmem:[#allocation3] sm:$0xff]
  %v942 = vld [vmem:[#allocation3 + $0x8] sm:$0xff]
  %v943 = vld [vmem:[#allocation3 + $0x10] sm:$0xff]
  %v944 = vld [vmem:[#allocation3 + $0x18] sm:$0xff]
  %v945 = vld [vmem:[#allocation3 + $0x20] sm:$0xff]
  %v946 = vld [vmem:[#allocation3 + $0x28] sm:$0xff]
  %v947 = vld [vmem:[#allocation3 + $0x30] sm:$0xff]
  %v948 = vld [vmem:[#allocation3 + $0x38] sm:$0xff]
  %v949 = vpack.c.bf16 %v942, %v941
  %v950 = vpack.c.bf16 %v944, %v943
  %v951 = vpack.c.bf16 %v946, %v945
  %v952 = vpack.c.bf16 %v948, %v947
  %v953 = vld [vmem:[%s3] sm:$0xf]
  %v954 = vld [vmem:[%s3 + $0x4] sm:$0xf]
  %v955 = vld [vmem:[%s3 + $0x8] sm:$0xf]
  %v956 = vld [vmem:[%s3 + $0xc] sm:$0xf]
  %v957 = vld [vmem:[%s3 + $0x10] sm:$0xf]
  %v958 = vld [vmem:[%s3 + $0x14] sm:$0xf]
  %v959 = vld [vmem:[%s3 + $0x18] sm:$0xf]
  %v960 = vld [vmem:[%s3 + $0x1c] sm:$0xf]
  %v961 = vld [vmem:[%s3 + $0x20] sm:$0xf]
  %v962 = vld [vmem:[%s3 + $0x24] sm:$0xf]
  %v963 = vld [vmem:[%s3 + $0x28] sm:$0xf]
  %v964 = vld [vmem:[%s3 + $0x2c] sm:$0xf]
  %v965 = vld [vmem:[%s3 + $0x30] sm:$0xf]
  %v966 = vld [vmem:[%s3 + $0x34] sm:$0xf]
  %v967 = vld [vmem:[%s3 + $0x38] sm:$0xf]
  %v968 = vld [vmem:[%s3 + $0x3c] sm:$0xf]
  %v969 = vld [vmem:[%s4] sm:$0x1]
  %v971 = vperm.slane %v969, 0
  %v989 = vunpack.c.l.b16 %v953
  %v990 = vunpack.c.l.b16 %v954
  %v991 = vunpack.c.l.b16 %v955
  %v992 = vunpack.c.l.b16 %v956
  %v993 = vunpack.c.l.b16 %v957
  %v994 = vunpack.c.l.b16 %v958
  %v995 = vunpack.c.l.b16 %v959
  %v996 = vunpack.c.l.b16 %v960
  %v997 = vunpack.c.l.b16 %v961
  %v998 = vunpack.c.l.b16 %v962
  %v999 = vunpack.c.l.b16 %v963
  %v1000 = vunpack.c.l.b16 %v964
  %v1001 = vunpack.c.l.b16 %v965
  %v1002 = vunpack.c.l.b16 %v966
  %v1003 = vunpack.c.l.b16 %v967
  %v1004 = vunpack.c.l.b16 %v968
  %v1005 = vpack.c.b16 %v990, %v989
  %v1006 = vpack.c.b16 %v992, %v991
  %v1007 = vpack.c.b16 %v994, %v993
  %v1008 = vpack.c.b16 %v996, %v995
  %v1009 = vpack.c.b16 %v998, %v997
  %v1010 = vpack.c.b16 %v1000, %v999
  %v1011 = vpack.c.b16 %v1002, %v1001
  %v1012 = vpack.c.b16 %v1004, %v1003
  %1021 = vmatpush.bf16.msra.mxu0 %v1012
  %1022 = vmatpush.bf16.msra.mxu0 %v1011
  %1023 = vmatpush.bf16.msra.mxu0 %v1010
  %1024 = vmatpush.bf16.msra.mxu0 %v1009
  %1025 = vmatpush.bf16.msra.mxu0 %v1008
  %1026 = vmatpush.bf16.msra.mxu0 %v1007
  %1027 = vmatpush.bf16.msra.mxu0 %v1006
  %1028 = vmatpush.bf16.msra.mxu0 %v1005
  %1029 = vmatmul.bf16.gmra.mxu0 %v949
  %v1030 = vpop.f32.mrf.mxu0
  %v1031 = vadd.f32 %v971, %v1030
  %v1032 = vpop.f32.mrf.mxu0
  %v1033 = vadd.f32 %v971, %v1032
  %1034 = vmatmul.bf16.gmra.mxu0 %v950
  %v1035 = vpop.f32.mrf.mxu0
  %v1036 = vadd.f32 %v971, %v1035
  %v1037 = vpop.f32.mrf.mxu0
  %v1038 = vadd.f32 %v971, %v1037
  %1039 = vmatmul.bf16.gmra.mxu0 %v951
  %v1040 = vpop.f32.mrf.mxu0
  %v1041 = vadd.f32 %v971, %v1040
  %v1042 = vpop.f32.mrf.mxu0
  %v1043 = vadd.f32 %v971, %v1042
  %1044 = vmatmul.bf16.gmra.mxu0 %v952
  %v1045 = vpop.f32.mrf.mxu0
  %v1046 = vadd.f32 %v971, %v1045
  %v1047 = vpop.f32.mrf.mxu0
  %v1048 = vadd.f32 %v971, %v1047
  %1049 = vdwg.mxu0
  %1050 = vst [vmem:[%s5] sm:$0xff] %v1031
  %1051 = vst [vmem:[%s5 + $0x8] sm:$0xff] %v1033
  %1052 = vst [vmem:[%s5 + $0x10] sm:$0xff] %v1036
  %1053 = vst [vmem:[%s5 + $0x18] sm:$0xff] %v1038
  %1054 = vst [vmem:[%s5 + $0x20] sm:$0xff] %v1041
  %1055 = vst [vmem:[%s5 + $0x28] sm:$0xff] %v1043
  %1056 = vst [vmem:[%s5 + $0x30] sm:$0xff] %v1046
  %1057 = vst [vmem:[%s5 + $0x38] sm:$0xff] %v1048
  // Predicated region
  $region26: #{gru_classifier_forward.3} parent=0 // pred_check
    _
  $region27: #{gru_classifier_forward.3} parent=0 // pred_check_branch
    %1059 = sbr.rel (0) target = $region29
  $region28: #{gru_classifier_forward.3} parent=0 // pred_region
    _
  $region29: #{gru_classifier_forward.3} parent=0 // pred_fallthru
    _
  // Predicated region
  $region30: #{gru_classifier_forward.3} parent=0 // pred_check
    _
  $region31: #{gru_classifier_forward.3} parent=0 // pred_check_branch
    %1061 = sbr.rel (0) target = $region33
  $region32: #{gru_classifier_forward.3} parent=0 // pred_region
    _
  $region33: #{gru_classifier_forward.3} parent=0 // pred_fallthru
    _

</llo_original>
